<compile_context>
chip_gen: v6e
topology: v6e:2x2x1
jax: 0.10.0
libtpu: 0.0.40
codegen_flags: <defaults>
</compile_context>

<pallas_src>
import functools

import jax
import jax.numpy as jnp
import numpy as np
from jax import lax
from jax.experimental import pallas as pl
from jax.experimental.pallas import tpu as pltpu


# ---------------------------------------------------------------------------
# Fused kernel: one grid step == (sequence half h, query-row tile qi)
# ---------------------------------------------------------------------------
def _binary_attention_kernel(xq_ref, xk_ref, xv_ref,
                             wq_ref, wk_ref, wv_ref, wo_ref,
                             bq_ref, bk_ref, bv_ref, bo_ref,
                             out_ref, aw_ref,
                             ctx_ref, *, num_heads):
    # xq_ref          : (B, tq,  d_model)  query rows of this (half, q-tile)
    # xk_ref / xv_ref : (B, mid, d_model)  all rows of this half
    # w*_ref          : (d_model, d_model) PyTorch layout (out, in)
    # b*_ref          : (1, d_model)
    # out_ref         : (B, tq, d_model)
    # aw_ref          : (B, num_heads, tq, mid)
    # ctx_ref         : VMEM scratch (B, tq, d_model) f32 context slab
    B, tq, d_model = xq_ref.shape
    mid = xk_ref.shape[1]
    depth = d_model // num_heads

    # bf16 operands for the MXU; accumulation stays f32.
    xq = xq_ref[...].astype(jnp.bfloat16)
    xk = xk_ref[...].astype(jnp.bfloat16)
    xv = xv_ref[...].astype(jnp.bfloat16)
    wq = wq_ref[...].astype(jnp.bfloat16)
    wk = wk_ref[...].astype(jnp.bfloat16)
    wv = wv_ref[...].astype(jnp.bfloat16)
    wo = wo_ref[...].astype(jnp.bfloat16)

    # Contract the LAST dims of both operands (== x @ W^T): MXU-native,
    # no XLU transpose, no extra VMEM copy.
    dn_proj = (((2,), (1,)), ((), ()))        # (B,m,d)   x (dout,din) -> (B,m,dout)
    dn_qk   = (((2,), (2,)), ((0,), (0,)))    # (B,q,dep) x (B,k,dep)  -> (B,q,k)
    dn_pv   = (((2,), (1,)), ((0,), (0,)))    # (B,q,k)   x (B,k,dep)  -> (B,q,dep)

    # Full-width, lane-dense Q/K/V projections; one bias add each (hoisted out
    # of the head loop).  1/sqrt(depth) is already folded into wq/bq.
    q_full = lax.dot_general(xq, wq, dn_proj,
                             preferred_element_type=jnp.float32) + bq_ref[...]
    k_full = lax.dot_general(xk, wk, dn_proj,
                             preferred_element_type=jnp.float32) + bk_ref[...]
    v_full = lax.dot_general(xv, wv, dn_proj,
                             preferred_element_type=jnp.float32) + bv_ref[...]

    q_b = q_full.astype(jnp.bfloat16)
    k_b = k_full.astype(jnp.bfloat16)
    v_b = v_full.astype(jnp.bfloat16)

    # Static per-head loop.  The head split is only a static lane slice; every
    # per-head result goes straight to a ref, so there are no loop carries.
    for h in range(num_heads):
        sl = slice(h * depth, (h + 1) * depth)

        # Scores + numerically stable softmax (f32 throughout).
        s = lax.dot_general(q_b[:, :, sl], k_b[:, :, sl], dn_qk,
                            preferred_element_type=jnp.float32)      # (B,tq,mid)
        s = s - jnp.max(s, axis=-1, keepdims=True)
        p = jnp.exp(s)
        p = p * pl.reciprocal(jnp.sum(p, axis=-1, keepdims=True), approx=True)

        # Lane-dense (last dim = mid) per-head store of the attention weights.
        aw_ref[:, h, :, :] = p.astype(aw_ref.dtype)

        # weights @ V for this head, written into the context slab.
        ctx_ref[:, :, sl] = lax.dot_general(p.astype(jnp.bfloat16),
                                            v_b[:, :, sl], dn_pv,
                                            preferred_element_type=jnp.float32)

    # Single K-dense fc projection over the full context slab.
    ctx = ctx_ref[...].astype(jnp.bfloat16)
    out = lax.dot_general(ctx, wo, dn_proj,
                          preferred_element_type=jnp.float32) + bo_ref[...]
    out_ref[...] = out.astype(out_ref.dtype)


# ---------------------------------------------------------------------------
# Wrapper: one pallas_call; only free reshapes outside
# ---------------------------------------------------------------------------
def _pick_q_tile(mid):
    # v6e/v7x MXU is 2x256^2 -> prefer 256-row q tiles; v5e prefers 128.
    for t in (256, 128):
        if mid % t == 0:
            return t
    return mid          # toy shapes: block dims must equal the full array dims


def binary_attention(params, q, k, v, num_heads, *, aw_dtype=jnp.float32):
    B, S, d_model = q.shape
    assert S % 2 == 0, "BinaryAttention kernel assumes an even sequence length"
    assert d_model % num_heads == 0
    mid = S // 2
    depth = d_model // num_heads
    scale = 1.0 / float(np.sqrt(depth))

    tq = _pick_q_tile(mid)
    n_q = mid // tq

    # Fold the attention scale into the Q projection parameters.
    wq_w = params["wq_w"] * scale
    wq_b = params["wq_b"] * scale

    # Free reshapes only: (B, S, d) -> (B, 2, mid, d); biases -> (1, d).
    q4 = q.reshape(B, 2, mid, d_model)
    k4 = k.reshape(B, 2, mid, d_model)
    v4 = v.reshape(B, 2, mid, d_model)

    def b2(b):
        return b.reshape(1, d_model)

    kernel = functools.partial(_binary_attention_kernel, num_heads=num_heads)

    q_spec = pl.BlockSpec((B, pl.Squeezed(), tq, d_model),
                          lambda h, qi: (0, h, qi, 0))
    kv_spec = pl.BlockSpec((B, pl.Squeezed(), mid, d_model),
                           lambda h, qi: (0, h, 0, 0))
    out_spec = pl.BlockSpec((B, pl.Squeezed(), tq, d_model),
                            lambda h, qi: (0, h, qi, 0))
    w_spec = pl.BlockSpec((d_model, d_model), lambda h, qi: (0, 0))
    b_spec = pl.BlockSpec((1, d_model), lambda h, qi: (0, 0))
    aw_spec = pl.BlockSpec((pl.Squeezed(), B, num_heads, tq, mid),
                           lambda h, qi: (h, 0, 0, qi, 0))

    out4, aw = pl.pallas_call(
        kernel,
        out_shape=(
            jax.ShapeDtypeStruct((B, 2, mid, d_model), jnp.float32),
            jax.ShapeDtypeStruct((2, B, num_heads, mid, mid), aw_dtype),
        ),
        grid_spec=pltpu.PrefetchScalarGridSpec(
            num_scalar_prefetch=0,
            grid=(2, n_q),
            in_specs=[q_spec, kv_spec, kv_spec,
                      w_spec, w_spec, w_spec, w_spec,
                      b_spec, b_spec, b_spec, b_spec],
            out_specs=[out_spec, aw_spec],
            scratch_shapes=[pltpu.VMEM((B, tq, d_model), jnp.float32)],
        ),
        compiler_params=pltpu.CompilerParams(
            dimension_semantics=("parallel", "parallel"),
            vmem_limit_bytes=32 * 1024 * 1024,
        ),
    )(q4, k4, v4,
      wq_w, params["wk_w"], params["wv_w"], params["fc_w"],
      b2(wq_b), b2(params["wk_b"]), b2(params["wv_b"]), b2(params["fc_b"]))

    out = out4.reshape(B, S, d_model)              # front rows then back rows
    return out, aw[0], aw[1]                       # (out, weights_front, weights_back)


# ---------------------------------------------------------------------------
# Pure-JAX reference (mirrors the PyTorch module exactly, f32 throughout)
# ---------------------------------------------------------------------------
def binary_attention_ref(params, q, k, v, num_heads):
    B, S, d_model = q.shape
    depth = d_model // num_heads
    mid = S // 2
    scale = 1.0 / np.sqrt(depth)

    def proj(x, w, b):
        y = x @ w.T + b
        return y.reshape(B, S, num_heads, depth).transpose(0, 2, 1, 3)

    qp = proj(q, params["wq_w"], params["wq_b"])
    kp = proj(k, params["wk_w"], params["wk_b"])
    vp = proj(v, params["wv_w"], params["wv_b"])

    def attn(qh, kh, vh):
        s = jnp.einsum("bhqd,bhkd->bhqk", qh, kh) * scale
        w = jax.nn.softmax(s, axis=-1)
        return jnp.einsum("bhqk,bhkd->bhqd", w, vh), w

    of, wf = attn(qp[:, :, :mid], kp[:, :, :mid], vp[:, :, :mid])
    ob, wb = attn(qp[:, :, mid:], kp[:, :, mid:], vp[:, :, mid:])
    out = jnp.concatenate([of, ob], axis=2).transpose(0, 2, 1, 3).reshape(B, S, d_model)
    out = out @ params["fc_w"].T + params["fc_b"]
    return out, wf, wb


# ---------------------------------------------------------------------------
# Main
# ---------------------------------------------------------------------------
if __name__ == "__main__":
    d_model, num_heads = 32, 4
    B, S = 2, 8

    key = jax.random.PRNGKey(0)
    keys = jax.random.split(key, 12)

    def lin_init(kw, kb, fan_in, fan_out):
        bound = 1.0 / np.sqrt(fan_in)
        w = jax.random.uniform(kw, (fan_out, fan_in), jnp.float32, -bound, bound)
        b = jax.random.uniform(kb, (fan_out,), jnp.float32, -bound, bound)
        return w, b

    params = {}
    params["wq_w"], params["wq_b"] = lin_init(keys[0], keys[1], d_model, d_model)
    params["wk_w"], params["wk_b"] = lin_init(keys[2], keys[3], d_model, d_model)
    params["wv_w"], params["wv_b"] = lin_init(keys[4], keys[5], d_model, d_model)
    params["fc_w"], params["fc_b"] = lin_init(keys[6], keys[7], d_model, d_model)

    q = jax.random.normal(keys[8], (B, S, d_model), jnp.float32)
    k = jax.random.normal(keys[9], (B, S, d_model), jnp.float32)
    v = jax.random.normal(keys[10], (B, S, d_model), jnp.float32)

    out, w_front, w_back = binary_attention(params, q, k, v, num_heads)
    out = jax.block_until_ready(out)
    w_front = jax.block_until_ready(w_front)
    w_back = jax.block_until_ready(w_back)

    out_r, w_front_r, w_back_r = binary_attention_ref(params, q, k, v, num_heads)

    # bf16 MXU operands (three chained bf16 matmul stages) + approx reciprocal
    # vs. the f32 reference -> bf16-appropriate tolerances.
    assert np.allclose(np.asarray(out), np.asarray(out_r), atol=5e-2, rtol=5e-2)
    assert np.allclose(np.asarray(w_front), np.asarray(w_front_r), atol=2e-2, rtol=2e-2)
    assert np.allclose(np.asarray(w_back), np.asarray(w_back_r), atol=2e-2, rtol=2e-2)

    print("KERNEL_OK")
</pallas_src>

<mosaic_0001>
module attributes {stable_mosaic.version = 11 : i64} {
  func.func @_binary_attention_kernel(%arg0: i32, %arg1: i32, %arg2: memref<2x1x4x32xf32, #tpu.memory_space<vmem>>, %arg3: memref<2x1x4x32xf32, #tpu.memory_space<vmem>>, %arg4: memref<2x1x4x32xf32, #tpu.memory_space<vmem>>, %arg5: memref<32x32xf32, #tpu.memory_space<vmem>>, %arg6: memref<32x32xf32, #tpu.memory_space<vmem>>, %arg7: memref<32x32xf32, #tpu.memory_space<vmem>>, %arg8: memref<32x32xf32, #tpu.memory_space<vmem>>, %arg9: memref<1x32xf32, #tpu.memory_space<vmem>>, %arg10: memref<1x32xf32, #tpu.memory_space<vmem>>, %arg11: memref<1x32xf32, #tpu.memory_space<vmem>>, %arg12: memref<1x32xf32, #tpu.memory_space<vmem>>, %arg13: memref<2x1x4x32xf32, #tpu.memory_space<vmem>>, %arg14: memref<1x2x4x4x4xf32, #tpu.memory_space<vmem>>, %arg15: memref<2x4x32xf32, #tpu.memory_space<vmem>>) attributes {dimension_semantics = [#tpu.dimension_semantics<parallel>, #tpu.dimension_semantics<parallel>], iteration_bounds = array<i64: 2, 1>, scalar_prefetch = 0 : i64, scratch_operands = 1 : i64, tpu.core_type = #tpu.core_type<tc>, window_params = [{transform_indices = @transform_0, window_bounds = array<i64: 2, 1, 4, 32>}, {transform_indices = @transform_1, window_bounds = array<i64: 2, 1, 4, 32>}, {transform_indices = @transform_2, window_bounds = array<i64: 2, 1, 4, 32>}, {pipeline_mode = #tpu.pipeline_mode<synchronous>, transform_indices = @transform_3, window_bounds = array<i64: 32, 32>}, {pipeline_mode = #tpu.pipeline_mode<synchronous>, transform_indices = @transform_4, window_bounds = array<i64: 32, 32>}, {pipeline_mode = #tpu.pipeline_mode<synchronous>, transform_indices = @transform_5, window_bounds = array<i64: 32, 32>}, {pipeline_mode = #tpu.pipeline_mode<synchronous>, transform_indices = @transform_6, window_bounds = array<i64: 32, 32>}, {pipeline_mode = #tpu.pipeline_mode<synchronous>, transform_indices = @transform_7, window_bounds = array<i64: 1, 32>}, {pipeline_mode = #tpu.pipeline_mode<synchronous>, transform_indices = @transform_8, window_bounds = array<i64: 1, 32>}, {pipeline_mode = #tpu.pipeline_mode<synchronous>, transform_indices = @transform_9, window_bounds = array<i64: 1, 32>}, {pipeline_mode = #tpu.pipeline_mode<synchronous>, transform_indices = @transform_10, window_bounds = array<i64: 1, 32>}, {transform_indices = @transform_11, window_bounds = array<i64: 2, 1, 4, 32>}, {transform_indices = @transform_12, window_bounds = array<i64: 1, 2, 4, 4, 4>}]} {
    %c0 = arith.constant 0 : index
    %c0_0 = arith.constant 0 : index
    %c0_1 = arith.constant 0 : index
    %c0_2 = arith.constant 0 : index
    %0 = vector.load %arg2[%c0, %c0_0, %c0_1, %c0_2] : memref<2x1x4x32xf32, #tpu.memory_space<vmem>>, vector<2x1x4x32xf32>
    %1 = vector.shape_cast %0 : vector<2x1x4x32xf32> to vector<2x4x32xf32>
    %2 = arith.truncf %1 : vector<2x4x32xf32> to vector<2x4x32xbf16>
    %c0_3 = arith.constant 0 : index
    %c0_4 = arith.constant 0 : index
    %c0_5 = arith.constant 0 : index
    %c0_6 = arith.constant 0 : index
    %3 = vector.load %arg3[%c0_3, %c0_4, %c0_5, %c0_6] : memref<2x1x4x32xf32, #tpu.memory_space<vmem>>, vector<2x1x4x32xf32>
    %4 = vector.shape_cast %3 : vector<2x1x4x32xf32> to vector<2x4x32xf32>
    %5 = arith.truncf %4 : vector<2x4x32xf32> to vector<2x4x32xbf16>
    %c0_7 = arith.constant 0 : index
    %c0_8 = arith.constant 0 : index
    %c0_9 = arith.constant 0 : index
    %c0_10 = arith.constant 0 : index
    %6 = vector.load %arg4[%c0_7, %c0_8, %c0_9, %c0_10] : memref<2x1x4x32xf32, #tpu.memory_space<vmem>>, vector<2x1x4x32xf32>
    %7 = vector.shape_cast %6 : vector<2x1x4x32xf32> to vector<2x4x32xf32>
    %8 = arith.truncf %7 : vector<2x4x32xf32> to vector<2x4x32xbf16>
    %c0_11 = arith.constant 0 : index
    %c0_12 = arith.constant 0 : index
    %9 = vector.load %arg5[%c0_11, %c0_12] : memref<32x32xf32, #tpu.memory_space<vmem>>, vector<32x32xf32>
    %10 = arith.truncf %9 : vector<32x32xf32> to vector<32x32xbf16>
    %c0_13 = arith.constant 0 : index
    %c0_14 = arith.constant 0 : index
    %11 = vector.load %arg6[%c0_13, %c0_14] : memref<32x32xf32, #tpu.memory_space<vmem>>, vector<32x32xf32>
    %12 = arith.truncf %11 : vector<32x32xf32> to vector<32x32xbf16>
    %c0_15 = arith.constant 0 : index
    %c0_16 = arith.constant 0 : index
    %13 = vector.load %arg7[%c0_15, %c0_16] : memref<32x32xf32, #tpu.memory_space<vmem>>, vector<32x32xf32>
    %14 = arith.truncf %13 : vector<32x32xf32> to vector<32x32xbf16>
    %c0_17 = arith.constant 0 : index
    %c0_18 = arith.constant 0 : index
    %15 = vector.load %arg8[%c0_17, %c0_18] : memref<32x32xf32, #tpu.memory_space<vmem>>, vector<32x32xf32>
    %16 = arith.truncf %15 : vector<32x32xf32> to vector<32x32xbf16>
    %cst = arith.constant dense<0.000000e+00> : vector<2x4x32xf32>
    %17 = tpu.matmul %2, %10, %cst {dimension_numbers = #tpu.dot_dimension_numbers<[2], [1], [0, 1], [0], [0, 0, 0, 1, 1, 0], [], []>} : vector<2x4x32xbf16>, vector<32x32xbf16>, vector<2x4x32xf32> -> vector<2x4x32xf32>
    %c0_19 = arith.constant 0 : index
    %c0_20 = arith.constant 0 : index
    %18 = vector.load %arg9[%c0_19, %c0_20] : memref<1x32xf32, #tpu.memory_space<vmem>>, vector<1x32xf32>
    %19 = vector.shape_cast %18 : vector<1x32xf32> to vector<1x1x32xf32>
    %20 = vector.broadcast %19 : vector<1x1x32xf32> to vector<2x4x32xf32>
    %21 = arith.addf %17, %20 : vector<2x4x32xf32>
    %cst_21 = arith.constant dense<0.000000e+00> : vector<2x4x32xf32>
    %22 = tpu.matmul %5, %12, %cst_21 {dimension_numbers = #tpu.dot_dimension_numbers<[2], [1], [0, 1], [0], [0, 0, 0, 1, 1, 0], [], []>} : vector<2x4x32xbf16>, vector<32x32xbf16>, vector<2x4x32xf32> -> vector<2x4x32xf32>
    %c0_22 = arith.constant 0 : index
    %c0_23 = arith.constant 0 : index
    %23 = vector.load %arg10[%c0_22, %c0_23] : memref<1x32xf32, #tpu.memory_space<vmem>>, vector<1x32xf32>
    %24 = vector.shape_cast %23 : vector<1x32xf32> to vector<1x1x32xf32>
    %25 = vector.broadcast %24 : vector<1x1x32xf32> to vector<2x4x32xf32>
    %26 = arith.addf %22, %25 : vector<2x4x32xf32>
    %cst_24 = arith.constant dense<0.000000e+00> : vector<2x4x32xf32>
    %27 = tpu.matmul %8, %14, %cst_24 {dimension_numbers = #tpu.dot_dimension_numbers<[2], [1], [0, 1], [0], [0, 0, 0, 1, 1, 0], [], []>} : vector<2x4x32xbf16>, vector<32x32xbf16>, vector<2x4x32xf32> -> vector<2x4x32xf32>
    %c0_25 = arith.constant 0 : index
    %c0_26 = arith.constant 0 : index
    %28 = vector.load %arg11[%c0_25, %c0_26] : memref<1x32xf32, #tpu.memory_space<vmem>>, vector<1x32xf32>
    %29 = vector.shape_cast %28 : vector<1x32xf32> to vector<1x1x32xf32>
    %30 = vector.broadcast %29 : vector<1x1x32xf32> to vector<2x4x32xf32>
    %31 = arith.addf %27, %30 : vector<2x4x32xf32>
    %32 = arith.truncf %21 : vector<2x4x32xf32> to vector<2x4x32xbf16>
    %33 = arith.truncf %26 : vector<2x4x32xf32> to vector<2x4x32xbf16>
    %34 = arith.truncf %31 : vector<2x4x32xf32> to vector<2x4x32xbf16>
    %35 = vector.extract_strided_slice %32 {offsets = [0, 0, 0], sizes = [2, 4, 8], strides = [1, 1, 1]} : vector<2x4x32xbf16> to vector<2x4x8xbf16>
    %36 = vector.extract_strided_slice %33 {offsets = [0, 0, 0], sizes = [2, 4, 8], strides = [1, 1, 1]} : vector<2x4x32xbf16> to vector<2x4x8xbf16>
    %cst_27 = arith.constant dense<0.000000e+00> : vector<2x4x4xf32>
    %37 = tpu.matmul %35, %36, %cst_27 {dimension_numbers = #tpu.dot_dimension_numbers<[2], [2], [1], [1], [0, 0, 0, 1, 1, 1], [0], [0]>} : vector<2x4x8xbf16>, vector<2x4x8xbf16>, vector<2x4x4xf32> -> vector<2x4x4xf32>
    %cst_28 = arith.constant dense<0xFF800000> : vector<2x4xf32>
    %38 = vector.multi_reduction <maximumf>, %37, %cst_28 [2] : vector<2x4x4xf32> to vector<2x4xf32>
    %39 = vector.shape_cast %38 : vector<2x4xf32> to vector<2x4x1xf32>
    %40 = vector.broadcast %39 : vector<2x4x1xf32> to vector<2x4x4xf32>
    %41 = arith.subf %37, %40 : vector<2x4x4xf32>
    %42 = math.exp %41 : vector<2x4x4xf32>
    %cst_29 = arith.constant dense<0.000000e+00> : vector<2x4xf32>
    %43 = vector.multi_reduction <add>, %42, %cst_29 [2] : vector<2x4x4xf32> to vector<2x4xf32>
    %44 = vector.shape_cast %43 : vector<2x4xf32> to vector<2x4x1xf32>
    %45 = tpu.reciprocal %44 {approx = true} : vector<2x4x1xf32> -> vector<2x4x1xf32>
    %46 = vector.broadcast %45 : vector<2x4x1xf32> to vector<2x4x4xf32>
    %47 = arith.mulf %42, %46 : vector<2x4x4xf32>
    %c0_30 = arith.constant 0 : index
    %c0_31 = arith.constant 0 : index
    %c0_32 = arith.constant 0 : index
    %c0_33 = arith.constant 0 : index
    %c0_34 = arith.constant 0 : index
    %48 = vector.load %arg14[%c0_30, %c0_31, %c0_32, %c0_33, %c0_34] : memref<1x2x4x4x4xf32, #tpu.memory_space<vmem>>, vector<1x2x1x4x4xf32>
    %49 = vector.shape_cast %48 : vector<1x2x1x4x4xf32> to vector<2x4x4xf32>
    %50 = vector.shape_cast %47 : vector<2x4x4xf32> to vector<1x2x1x4x4xf32>
    tpu.vector_store %arg14[%c0_30, %c0_31, %c0_32, %c0_33, %c0_34], %50 {strides = array<i32>} : memref<1x2x4x4x4xf32, #tpu.memory_space<vmem>>, vector<1x2x1x4x4xf32>,
    %51 = arith.truncf %47 : vector<2x4x4xf32> to vector<2x4x4xbf16>
    %52 = vector.extract_strided_slice %34 {offsets = [0, 0, 0], sizes = [2, 4, 8], strides = [1, 1, 1]} : vector<2x4x32xbf16> to vector<2x4x8xbf16>
    %cst_35 = arith.constant dense<0.000000e+00> : vector<2x4x8xf32>
    %53 = tpu.matmul %51, %52, %cst_35 {dimension_numbers = #tpu.dot_dimension_numbers<[2], [1], [1], [2], [0, 0, 0, 1, 1, 2], [0], [0]>} : vector<2x4x4xbf16>, vector<2x4x8xbf16>, vector<2x4x8xf32> -> vector<2x4x8xf32>
    %c0_36 = arith.constant 0 : index
    %c0_37 = arith.constant 0 : index
    %c0_38 = arith.constant 0 : index
    %54 = vector.load %arg15[%c0_36, %c0_37, %c0_38] : memref<2x4x32xf32, #tpu.memory_space<vmem>>, vector<2x4x8xf32>
    tpu.vector_store %arg15[%c0_36, %c0_37, %c0_38], %53 {strides = array<i32>} : memref<2x4x32xf32, #tpu.memory_space<vmem>>, vector<2x4x8xf32>,
    %55 = vector.extract_strided_slice %32 {offsets = [0, 0, 8], sizes = [2, 4, 8], strides = [1, 1, 1]} : vector<2x4x32xbf16> to vector<2x4x8xbf16>
    %56 = vector.extract_strided_slice %33 {offsets = [0, 0, 8], sizes = [2, 4, 8], strides = [1, 1, 1]} : vector<2x4x32xbf16> to vector<2x4x8xbf16>
    %cst_39 = arith.constant dense<0.000000e+00> : vector<2x4x4xf32>
    %57 = tpu.matmul %55, %56, %cst_39 {dimension_numbers = #tpu.dot_dimension_numbers<[2], [2], [1], [1], [0, 0, 0, 1, 1, 1], [0], [0]>} : vector<2x4x8xbf16>, vector<2x4x8xbf16>, vector<2x4x4xf32> -> vector<2x4x4xf32>
    %cst_40 = arith.constant dense<0xFF800000> : vector<2x4xf32>
    %58 = vector.multi_reduction <maximumf>, %57, %cst_40 [2] : vector<2x4x4xf32> to vector<2x4xf32>
    %59 = vector.shape_cast %58 : vector<2x4xf32> to vector<2x4x1xf32>
    %60 = vector.broadcast %59 : vector<2x4x1xf32> to vector<2x4x4xf32>
    %61 = arith.subf %57, %60 : vector<2x4x4xf32>
    %62 = math.exp %61 : vector<2x4x4xf32>
    %cst_41 = arith.constant dense<0.000000e+00> : vector<2x4xf32>
    %63 = vector.multi_reduction <add>, %62, %cst_41 [2] : vector<2x4x4xf32> to vector<2x4xf32>
    %64 = vector.shape_cast %63 : vector<2x4xf32> to vector<2x4x1xf32>
    %65 = tpu.reciprocal %64 {approx = true} : vector<2x4x1xf32> -> vector<2x4x1xf32>
    %66 = vector.broadcast %65 : vector<2x4x1xf32> to vector<2x4x4xf32>
    %67 = arith.mulf %62, %66 : vector<2x4x4xf32>
    %c0_42 = arith.constant 0 : index
    %c0_43 = arith.constant 0 : index
    %c1 = arith.constant 1 : index
    %c0_44 = arith.constant 0 : index
    %c0_45 = arith.constant 0 : index
    %68 = vector.load %arg14[%c0_42, %c0_43, %c1, %c0_44, %c0_45] : memref<1x2x4x4x4xf32, #tpu.memory_space<vmem>>, vector<1x2x1x4x4xf32>
    %69 = vector.shape_cast %68 : vector<1x2x1x4x4xf32> to vector<2x4x4xf32>
    %70 = vector.shape_cast %67 : vector<2x4x4xf32> to vector<1x2x1x4x4xf32>
    tpu.vector_store %arg14[%c0_42, %c0_43, %c1, %c0_44, %c0_45], %70 {strides = array<i32>} : memref<1x2x4x4x4xf32, #tpu.memory_space<vmem>>, vector<1x2x1x4x4xf32>,
    %71 = arith.truncf %67 : vector<2x4x4xf32> to vector<2x4x4xbf16>
    %72 = vector.extract_strided_slice %34 {offsets = [0, 0, 8], sizes = [2, 4, 8], strides = [1, 1, 1]} : vector<2x4x32xbf16> to vector<2x4x8xbf16>
    %cst_46 = arith.constant dense<0.000000e+00> : vector<2x4x8xf32>
    %73 = tpu.matmul %71, %72, %cst_46 {dimension_numbers = #tpu.dot_dimension_numbers<[2], [1], [1], [2], [0, 0, 0, 1, 1, 2], [0], [0]>} : vector<2x4x4xbf16>, vector<2x4x8xbf16>, vector<2x4x8xf32> -> vector<2x4x8xf32>
    %c0_47 = arith.constant 0 : index
    %c0_48 = arith.constant 0 : index
    %c8 = arith.constant 8 : index
    %74 = vector.load %arg15[%c0_47, %c0_48, %c8] : memref<2x4x32xf32, #tpu.memory_space<vmem>>, vector<2x4x8xf32>
    tpu.vector_store %arg15[%c0_47, %c0_48, %c8], %73 {strides = array<i32>} : memref<2x4x32xf32, #tpu.memory_space<vmem>>, vector<2x4x8xf32>,
    %75 = vector.extract_strided_slice %32 {offsets = [0, 0, 16], sizes = [2, 4, 8], strides = [1, 1, 1]} : vector<2x4x32xbf16> to vector<2x4x8xbf16>
    %76 = vector.extract_strided_slice %33 {offsets = [0, 0, 16], sizes = [2, 4, 8], strides = [1, 1, 1]} : vector<2x4x32xbf16> to vector<2x4x8xbf16>
    %cst_49 = arith.constant dense<0.000000e+00> : vector<2x4x4xf32>
    %77 = tpu.matmul %75, %76, %cst_49 {dimension_numbers = #tpu.dot_dimension_numbers<[2], [2], [1], [1], [0, 0, 0, 1, 1, 1], [0], [0]>} : vector<2x4x8xbf16>, vector<2x4x8xbf16>, vector<2x4x4xf32> -> vector<2x4x4xf32>
    %cst_50 = arith.constant dense<0xFF800000> : vector<2x4xf32>
    %78 = vector.multi_reduction <maximumf>, %77, %cst_50 [2] : vector<2x4x4xf32> to vector<2x4xf32>
    %79 = vector.shape_cast %78 : vector<2x4xf32> to vector<2x4x1xf32>
    %80 = vector.broadcast %79 : vector<2x4x1xf32> to vector<2x4x4xf32>
    %81 = arith.subf %77, %80 : vector<2x4x4xf32>
    %82 = math.exp %81 : vector<2x4x4xf32>
    %cst_51 = arith.constant dense<0.000000e+00> : vector<2x4xf32>
    %83 = vector.multi_reduction <add>, %82, %cst_51 [2] : vector<2x4x4xf32> to vector<2x4xf32>
    %84 = vector.shape_cast %83 : vector<2x4xf32> to vector<2x4x1xf32>
    %85 = tpu.reciprocal %84 {approx = true} : vector<2x4x1xf32> -> vector<2x4x1xf32>
    %86 = vector.broadcast %85 : vector<2x4x1xf32> to vector<2x4x4xf32>
    %87 = arith.mulf %82, %86 : vector<2x4x4xf32>
    %c0_52 = arith.constant 0 : index
    %c0_53 = arith.constant 0 : index
    %c2 = arith.constant 2 : index
    %c0_54 = arith.constant 0 : index
    %c0_55 = arith.constant 0 : index
    %88 = vector.load %arg14[%c0_52, %c0_53, %c2, %c0_54, %c0_55] : memref<1x2x4x4x4xf32, #tpu.memory_space<vmem>>, vector<1x2x1x4x4xf32>
    %89 = vector.shape_cast %88 : vector<1x2x1x4x4xf32> to vector<2x4x4xf32>
    %90 = vector.shape_cast %87 : vector<2x4x4xf32> to vector<1x2x1x4x4xf32>
    tpu.vector_store %arg14[%c0_52, %c0_53, %c2, %c0_54, %c0_55], %90 {strides = array<i32>} : memref<1x2x4x4x4xf32, #tpu.memory_space<vmem>>, vector<1x2x1x4x4xf32>,
    %91 = arith.truncf %87 : vector<2x4x4xf32> to vector<2x4x4xbf16>
    %92 = vector.extract_strided_slice %34 {offsets = [0, 0, 16], sizes = [2, 4, 8], strides = [1, 1, 1]} : vector<2x4x32xbf16> to vector<2x4x8xbf16>
    %cst_56 = arith.constant dense<0.000000e+00> : vector<2x4x8xf32>
    %93 = tpu.matmul %91, %92, %cst_56 {dimension_numbers = #tpu.dot_dimension_numbers<[2], [1], [1], [2], [0, 0, 0, 1, 1, 2], [0], [0]>} : vector<2x4x4xbf16>, vector<2x4x8xbf16>, vector<2x4x8xf32> -> vector<2x4x8xf32>
    %c0_57 = arith.constant 0 : index
    %c0_58 = arith.constant 0 : index
    %c16 = arith.constant 16 : index
    %94 = vector.load %arg15[%c0_57, %c0_58, %c16] : memref<2x4x32xf32, #tpu.memory_space<vmem>>, vector<2x4x8xf32>
    tpu.vector_store %arg15[%c0_57, %c0_58, %c16], %93 {strides = array<i32>} : memref<2x4x32xf32, #tpu.memory_space<vmem>>, vector<2x4x8xf32>,
    %95 = vector.extract_strided_slice %32 {offsets = [0, 0, 24], sizes = [2, 4, 8], strides = [1, 1, 1]} : vector<2x4x32xbf16> to vector<2x4x8xbf16>
    %96 = vector.extract_strided_slice %33 {offsets = [0, 0, 24], sizes = [2, 4, 8], strides = [1, 1, 1]} : vector<2x4x32xbf16> to vector<2x4x8xbf16>
    %cst_59 = arith.constant dense<0.000000e+00> : vector<2x4x4xf32>
    %97 = tpu.matmul %95, %96, %cst_59 {dimension_numbers = #tpu.dot_dimension_numbers<[2], [2], [1], [1], [0, 0, 0, 1, 1, 1], [0], [0]>} : vector<2x4x8xbf16>, vector<2x4x8xbf16>, vector<2x4x4xf32> -> vector<2x4x4xf32>
    %cst_60 = arith.constant dense<0xFF800000> : vector<2x4xf32>
    %98 = vector.multi_reduction <maximumf>, %97, %cst_60 [2] : vector<2x4x4xf32> to vector<2x4xf32>
    %99 = vector.shape_cast %98 : vector<2x4xf32> to vector<2x4x1xf32>
    %100 = vector.broadcast %99 : vector<2x4x1xf32> to vector<2x4x4xf32>
    %101 = arith.subf %97, %100 : vector<2x4x4xf32>
    %102 = math.exp %101 : vector<2x4x4xf32>
    %cst_61 = arith.constant dense<0.000000e+00> : vector<2x4xf32>
    %103 = vector.multi_reduction <add>, %102, %cst_61 [2] : vector<2x4x4xf32> to vector<2x4xf32>
    %104 = vector.shape_cast %103 : vector<2x4xf32> to vector<2x4x1xf32>
    %105 = tpu.reciprocal %104 {approx = true} : vector<2x4x1xf32> -> vector<2x4x1xf32>
    %106 = vector.broadcast %105 : vector<2x4x1xf32> to vector<2x4x4xf32>
    %107 = arith.mulf %102, %106 : vector<2x4x4xf32>
    %c0_62 = arith.constant 0 : index
    %c0_63 = arith.constant 0 : index
    %c3 = arith.constant 3 : index
    %c0_64 = arith.constant 0 : index
    %c0_65 = arith.constant 0 : index
    %108 = vector.load %arg14[%c0_62, %c0_63, %c3, %c0_64, %c0_65] : memref<1x2x4x4x4xf32, #tpu.memory_space<vmem>>, vector<1x2x1x4x4xf32>
    %109 = vector.shape_cast %108 : vector<1x2x1x4x4xf32> to vector<2x4x4xf32>
    %110 = vector.shape_cast %107 : vector<2x4x4xf32> to vector<1x2x1x4x4xf32>
    tpu.vector_store %arg14[%c0_62, %c0_63, %c3, %c0_64, %c0_65], %110 {strides = array<i32>} : memref<1x2x4x4x4xf32, #tpu.memory_space<vmem>>, vector<1x2x1x4x4xf32>,
    %111 = arith.truncf %107 : vector<2x4x4xf32> to vector<2x4x4xbf16>
    %112 = vector.extract_strided_slice %34 {offsets = [0, 0, 24], sizes = [2, 4, 8], strides = [1, 1, 1]} : vector<2x4x32xbf16> to vector<2x4x8xbf16>
    %cst_66 = arith.constant dense<0.000000e+00> : vector<2x4x8xf32>
    %113 = tpu.matmul %111, %112, %cst_66 {dimension_numbers = #tpu.dot_dimension_numbers<[2], [1], [1], [2], [0, 0, 0, 1, 1, 2], [0], [0]>} : vector<2x4x4xbf16>, vector<2x4x8xbf16>, vector<2x4x8xf32> -> vector<2x4x8xf32>
    %c0_67 = arith.constant 0 : index
    %c0_68 = arith.constant 0 : index
    %c24 = arith.constant 24 : index
    %114 = vector.load %arg15[%c0_67, %c0_68, %c24] : memref<2x4x32xf32, #tpu.memory_space<vmem>>, vector<2x4x8xf32>
    tpu.vector_store %arg15[%c0_67, %c0_68, %c24], %113 {strides = array<i32>} : memref<2x4x32xf32, #tpu.memory_space<vmem>>, vector<2x4x8xf32>,
    %c0_69 = arith.constant 0 : index
    %c0_70 = arith.constant 0 : index
    %c0_71 = arith.constant 0 : index
    %115 = vector.load %arg15[%c0_69, %c0_70, %c0_71] : memref<2x4x32xf32, #tpu.memory_space<vmem>>, vector<2x4x32xf32>
    %116 = arith.truncf %115 : vector<2x4x32xf32> to vector<2x4x32xbf16>
    %cst_72 = arith.constant dense<0.000000e+00> : vector<2x4x32xf32>
    %117 = tpu.matmul %116, %16, %cst_72 {dimension_numbers = #tpu.dot_dimension_numbers<[2], [1], [0, 1], [0], [0, 0, 0, 1, 1, 0], [], []>} : vector<2x4x32xbf16>, vector<32x32xbf16>, vector<2x4x32xf32> -> vector<2x4x32xf32>
    %c0_73 = arith.constant 0 : index
    %c0_74 = arith.constant 0 : index
    %118 = vector.load %arg12[%c0_73, %c0_74] : memref<1x32xf32, #tpu.memory_space<vmem>>, vector<1x32xf32>
    %119 = vector.shape_cast %118 : vector<1x32xf32> to vector<1x1x32xf32>
    %120 = vector.broadcast %119 : vector<1x1x32xf32> to vector<2x4x32xf32>
    %121 = arith.addf %117, %120 : vector<2x4x32xf32>
    %c0_75 = arith.constant 0 : index
    %c0_76 = arith.constant 0 : index
    %c0_77 = arith.constant 0 : index
    %c0_78 = arith.constant 0 : index
    %122 = vector.load %arg13[%c0_75, %c0_76, %c0_77, %c0_78] : memref<2x1x4x32xf32, #tpu.memory_space<vmem>>, vector<2x1x4x32xf32>
    %123 = vector.shape_cast %122 : vector<2x1x4x32xf32> to vector<2x4x32xf32>
    %124 = vector.shape_cast %121 : vector<2x4x32xf32> to vector<2x1x4x32xf32>
    tpu.vector_store %arg13[%c0_75, %c0_76, %c0_77, %c0_78], %124 {strides = array<i32>} : memref<2x1x4x32xf32, #tpu.memory_space<vmem>>, vector<2x1x4x32xf32>,
    return
  }
  func.func @transform_0(%arg0: i32, %arg1: i32) -> (i32, i32, i32, i32) {
    %c0_i32 = arith.constant 0 : i32
    %c0_i32_0 = arith.constant 0 : i32
    %c0_i32_1 = arith.constant 0 : i32
    return %c0_i32, %arg0, %arg1, %c0_i32_0 : i32, i32, i32, i32
  }
  func.func @transform_1(%arg0: i32, %arg1: i32) -> (i32, i32, i32, i32) {
    %c0_i32 = arith.constant 0 : i32
    %c0_i32_0 = arith.constant 0 : i32
    %c0_i32_1 = arith.constant 0 : i32
    %c0_i32_2 = arith.constant 0 : i32
    return %c0_i32, %arg0, %c0_i32_0, %c0_i32_1 : i32, i32, i32, i32
  }
  func.func @transform_2(%arg0: i32, %arg1: i32) -> (i32, i32, i32, i32) {
    %c0_i32 = arith.constant 0 : i32
    %c0_i32_0 = arith.constant 0 : i32
    %c0_i32_1 = arith.constant 0 : i32
    %c0_i32_2 = arith.constant 0 : i32
    return %c0_i32, %arg0, %c0_i32_0, %c0_i32_1 : i32, i32, i32, i32
  }
  func.func @transform_3(%arg0: i32, %arg1: i32) -> (i32, i32) {
    %c0_i32 = arith.constant 0 : i32
    %c0_i32_0 = arith.constant 0 : i32
    %c0_i32_1 = arith.constant 0 : i32
    return %c0_i32, %c0_i32_0 : i32, i32
  }
  func.func @transform_4(%arg0: i32, %arg1: i32) -> (i32, i32) {
    %c0_i32 = arith.constant 0 : i32
    %c0_i32_0 = arith.constant 0 : i32
    %c0_i32_1 = arith.constant 0 : i32
    return %c0_i32, %c0_i32_0 : i32, i32
  }
  func.func @transform_5(%arg0: i32, %arg1: i32) -> (i32, i32) {
    %c0_i32 = arith.constant 0 : i32
    %c0_i32_0 = arith.constant 0 : i32
    %c0_i32_1 = arith.constant 0 : i32
    return %c0_i32, %c0_i32_0 : i32, i32
  }
  func.func @transform_6(%arg0: i32, %arg1: i32) -> (i32, i32) {
    %c0_i32 = arith.constant 0 : i32
    %c0_i32_0 = arith.constant 0 : i32
    %c0_i32_1 = arith.constant 0 : i32
    return %c0_i32, %c0_i32_0 : i32, i32
  }
  func.func @transform_7(%arg0: i32, %arg1: i32) -> (i32, i32) {
    %c0_i32 = arith.constant 0 : i32
    %c0_i32_0 = arith.constant 0 : i32
    %c0_i32_1 = arith.constant 0 : i32
    return %c0_i32, %c0_i32_0 : i32, i32
  }
  func.func @transform_8(%arg0: i32, %arg1: i32) -> (i32, i32) {
    %c0_i32 = arith.constant 0 : i32
    %c0_i32_0 = arith.constant 0 : i32
    %c0_i32_1 = arith.constant 0 : i32
    return %c0_i32, %c0_i32_0 : i32, i32
  }
  func.func @transform_9(%arg0: i32, %arg1: i32) -> (i32, i32) {
    %c0_i32 = arith.constant 0 : i32
    %c0_i32_0 = arith.constant 0 : i32
    %c0_i32_1 = arith.constant 0 : i32
    return %c0_i32, %c0_i32_0 : i32, i32
  }
  func.func @transform_10(%arg0: i32, %arg1: i32) -> (i32, i32) {
    %c0_i32 = arith.constant 0 : i32
    %c0_i32_0 = arith.constant 0 : i32
    %c0_i32_1 = arith.constant 0 : i32
    return %c0_i32, %c0_i32_0 : i32, i32
  }
  func.func @transform_11(%arg0: i32, %arg1: i32) -> (i32, i32, i32, i32) {
    %c0_i32 = arith.constant 0 : i32
    %c0_i32_0 = arith.constant 0 : i32
    %c0_i32_1 = arith.constant 0 : i32
    return %c0_i32, %arg0, %arg1, %c0_i32_0 : i32, i32, i32, i32
  }
  func.func @transform_12(%arg0: i32, %arg1: i32) -> (i32, i32, i32, i32, i32) {
    %c0_i32 = arith.constant 0 : i32
    %c0_i32_0 = arith.constant 0 : i32
    %c0_i32_1 = arith.constant 0 : i32
    %c0_i32_2 = arith.constant 0 : i32
    return %arg0, %c0_i32, %c0_i32_0, %arg1, %c0_i32_1 : i32, i32, i32, i32, i32
  }
}

</mosaic_0001>

<llo_original>
// kernel: tpu_custom_call.1
$region0: #{tpu_custom_call.1}
  #allocation0 [shape = 'u32[]', space=smem, size = 0x4, offset = 0x4, fixed_abs, tag = 'smem constant byte address 0x4 - core index']
  #allocation1 [shape = 'u32[144,128]{1,0:T(1,128)}', space=vmem, size = 0x12000, scoped, tag = 'internal scratch']
  #allocation2 [shape = 'f32[2,4,32]{2,1,0:T(4,128)}', space=vmem, size = 0x1000, scoped, tag = 'scratch operand']
  %s0 = inlined_call_operand.hbm [shape: f32[2,2,4,32], index: 0, kind: input, shape index: {}]
  %s1 = inlined_call_operand.hbm [shape: f32[2,2,4,32], index: 1, kind: input, shape index: {}]
  %s2 = inlined_call_operand.hbm [shape: f32[2,2,4,32], index: 2, kind: input, shape index: {}]
  %s3 = inlined_call_operand.hbm [shape: f32[32,32], index: 3, kind: input, shape index: {}]
  %s4 = inlined_call_operand.hbm [shape: f32[32,32], index: 4, kind: input, shape index: {}]
  %s5 = inlined_call_operand.hbm [shape: f32[32,32], index: 5, kind: input, shape index: {}]
  %s6 = inlined_call_operand.hbm [shape: f32[32,32], index: 6, kind: input, shape index: {}]
  %s7 = inlined_call_operand.vmem [shape: f32[1,32], index: 7, kind: input, shape index: {}]
  %s8 = inlined_call_operand.vmem [shape: f32[1,32], index: 8, kind: input, shape index: {}]
  %s9 = inlined_call_operand.vmem [shape: f32[1,32], index: 9, kind: input, shape index: {}]
  %s10 = inlined_call_operand.vmem [shape: f32[1,32], index: 10, kind: input, shape index: {}]
  %s11 = inlined_call_operand.hbm [shape: f32[2,2,4,32], index: 11, kind: output, shape index: {0}]
  %s12 = inlined_call_operand.hbm [shape: f32[2,2,4,4,4], index: 12, kind: output, shape index: {1}]
  %13 = xla_tuple %s11, %s12
  %s14 = sld [smem:[#allocation0]]
  $region113: #{tpu_custom_call.1} parent=0
    _
  %s16 = ssub.s32 1, %s14
  %s17 = scalar_select 0, %s16, %s14
  $region1: #{tpu_custom_call.1} parent=0
    #allocation3 [shape = 'u8[8192]{0}', space=vmem, size = 0x2000, scoped, tag = 'input window, operand 0']
    #allocation4 [shape = 's32[2]{0}', space=sflag, size = 0x8, scoped, tag = 'scoped memory for tpu_custom_call.1']
    #allocation5 [shape = 's32[2]{0}', space=sflag, size = 0x8, scoped, tag = 'scoped memory for tpu_custom_call.1']
    #allocation6 [shape = 'u8[8192]{0}', space=vmem, size = 0x2000, scoped, tag = 'input window, operand 1']
    #allocation7 [shape = 's32[2]{0}', space=sflag, size = 0x8, scoped, tag = 'scoped memory for tpu_custom_call.1']
    #allocation8 [shape = 'u8[8192]{0}', space=vmem, size = 0x2000, scoped, tag = 'input window, operand 2']
    #allocation9 [shape = 'u8[16384]{0}', space=vmem, size = 0x4000, scoped, tag = 'input window, operand 3, single buffered']
    #allocation10 [shape = 's32[1]{0}', space=sflag, size = 0x4, scoped, tag = 'scoped memory for tpu_custom_call.1']
    #allocation11 [shape = 'u8[16384]{0}', space=vmem, size = 0x4000, scoped, tag = 'input window, operand 4, single buffered']
    #allocation12 [shape = 'u8[16384]{0}', space=vmem, size = 0x4000, scoped, tag = 'input window, operand 5, single buffered']
    #allocation13 [shape = 's32[1]{0}', space=sflag, size = 0x4, scoped, tag = 'scoped memory for tpu_custom_call.1']
    #allocation14 [shape = 'u8[16384]{0}', space=vmem, size = 0x4000, scoped, tag = 'input window, operand 6, single buffered']
    #allocation15 [shape = 'u8[8192]{0}', space=vmem, size = 0x2000, scoped, tag = 'output window, operand 0']
    #allocation16 [shape = 'u8[32768]{0}', space=vmem, size = 0x8000, scoped, tag = 'output window, operand 1']
    #allocation17 [shape = 's32[2]{0}', space=sflag, size = 0x8, scoped, tag = 'scoped memory for tpu_custom_call.1']
    %18 = vsyncpa [#allocation4], 0
    %s19 = scalar_lea.sflag [#allocation4], 1
    %20 = vsyncpa %s19, 0
    %21 = vsyncpa [#allocation7], 0
    %s22 = scalar_lea.sflag [#allocation7], 1
    %23 = vsyncpa %s22, 0
    %24 = vsyncpa [#allocation10], 0
    %25 = vsyncpa [#allocation13], 0
    %26 = vsyncpa [#allocation5], 0
    %s27 = scalar_lea.sflag [#allocation5], 1
    %28 = vsyncpa %s27, 0
    %29 = vsyncpa [#allocation17], 0
    %s30 = scalar_lea.sflag [#allocation17], 1
    %31 = vsyncpa %s30, 0
    loop: start=0, step=1, limit=4
    $region2: #{tpu_custom_call.1} parent=1 // loop_pre_header
      _
    $region3: #{tpu_custom_call.1} parent=1 // loop_header
      %s33 = sphi 0, %s37
      %p34 = scmp.ge.s32.totalorder %s33, 4
      %s40 = sphi 0, %s52
      %s41 = sphi 0, %s48
      %s42 = sphi 0, %s40
      %s43 = sphi 0, %s41
      %s44 = sphi 0, %s42
      %s45 = sphi 0, %s43
      %s57 = sphi 0, %s59
      %s60 = sphi 0, %s57
      %s61 = sphi 0, %s60
      %s77 = sphi 0, %s61
      %s83 = sphi 0, %s85
      %s86 = sphi 0, %s83
      %s87 = sphi 0, %s86
      %s103 = sphi 0, %s87
      %s109 = sphi 0, %s111
      %s112 = sphi 0, %s109
      %s113 = sphi 0, %s112
      %s129 = sphi 0, %s113
      %s133 = sphi 0, %s133
      %s135 = sphi 0, %s133
      %s136 = sphi 0, %s135
      %s150 = sphi 0, %s136
      %s154 = sphi 0, %s154
      %s156 = sphi 0, %s154
      %s157 = sphi 0, %s156
      %s171 = sphi 0, %s157
      %s175 = sphi 0, %s175
      %s177 = sphi 0, %s175
      %s178 = sphi 0, %s177
      %s192 = sphi 0, %s178
      %s196 = sphi 0, %s196
      %s198 = sphi 0, %s196
      %s199 = sphi 0, %s198
      %s213 = sphi 0, %s199
      %s217 = sphi 0, %s217
      %s219 = sphi 0, %s217
      %s220 = sphi 0, %s219
      %s234 = sphi 0, %s220
      %s238 = sphi 0, %s238
      %s240 = sphi 0, %s238
      %s241 = sphi 0, %s240
      %s255 = sphi 0, %s241
      %s259 = sphi 0, %s259
      %s261 = sphi 0, %s259
      %s262 = sphi 0, %s261
      %s276 = sphi 0, %s262
      %s280 = sphi 0, %s280
      %s282 = sphi 0, %s280
      %s283 = sphi 0, %s282
      %s297 = sphi 0, %s283
      %s305 = sphi 0, %s307
      %s308 = sphi 0, %s305
      %s309 = sphi 0, %s308
      %s325 = sphi 0, %s309
      %s333 = sphi 0, %s335
      %s336 = sphi 0, %s333
      %s337 = sphi 0, %s336
      %s353 = sphi 0, %s337
    $region4: #{tpu_custom_call.1} parent=1 // loop_header_branch
      %36 = sbr.rel (%p34) target = $region8
    $region5: #{tpu_custom_call.1} parent=1 // loop_body
      %s38 = ssub.s32 %s33, 1
      %s39 = ssub.s32 %s33, 2
      %s46 = sadd.s32 1, %s41
      %p47 = scmp.ge.s32.totalorder %s46, 1
      %s48 = scalar_select %p47, 0, %s46
      %s49 = sadd.s32 1, %s40
      %s50 = scalar_select %p47, %s49, %s40
      %p51 = scmp.ge.s32.totalorder %s50, 2
      %s52 = scalar_select %p51, 0, %s50
      %s53 = ssub.s32 %s40, %s52
      %s54 = ssub.s32 %s41, %s48
      %s55 = sor.u32 %s53, %s54
      %p56 = scmp.eq.s32.totalorder %s55, 0
      %s58 = sadd.s32 %s57, 1
      %s59 = scalar_select %p56, %s57, %s58
      %p62 = pneg %p56
      %p63 = scmp.eq.s32.totalorder %s33, 1
      %p64 = por %p62, %p63
      %p65 = scmp.ne.s32.totalorder %s57, %s60
      %p66 = scmp.eq.s32.totalorder %s33, 0
      %p67 = por %p65, %p66
      %p68 = scmp.ne.s32.totalorder %s57, %s60
      %p69 = scmp.eq.s32.totalorder %s38, 1
      %p70 = por %p68, %p69
      %p71 = scmp.ne.s32.totalorder %s60, %s61
      %p72 = scmp.eq.s32.totalorder %s38, 0
      %p73 = por %p71, %p72
      %p74 = scmp.ne.s32.totalorder %s60, %s61
      %p75 = scmp.eq.s32.totalorder %s39, 1
      %p76 = por %p74, %p75
      %p78 = scmp.ne.s32.totalorder %s61, %s77
      %p79 = scmp.eq.s32.totalorder %s39, 0
      %p80 = por %p78, %p79
      %s81 = ssub.s32 %s40, %s52
      %p82 = scmp.eq.s32.totalorder %s81, 0
      %s84 = sadd.s32 %s83, 1
      %s85 = scalar_select %p82, %s83, %s84
      %p88 = pneg %p82
      %p89 = scmp.eq.s32.totalorder %s33, 1
      %p90 = por %p88, %p89
      %p91 = scmp.ne.s32.totalorder %s83, %s86
      %p92 = scmp.eq.s32.totalorder %s33, 0
      %p93 = por %p91, %p92
      %p94 = scmp.ne.s32.totalorder %s83, %s86
      %p95 = scmp.eq.s32.totalorder %s38, 1
      %p96 = por %p94, %p95
      %p97 = scmp.ne.s32.totalorder %s86, %s87
      %p98 = scmp.eq.s32.totalorder %s38, 0
      %p99 = por %p97, %p98
      %p100 = scmp.ne.s32.totalorder %s86, %s87
      %p101 = scmp.eq.s32.totalorder %s39, 1
      %p102 = por %p100, %p101
      %p104 = scmp.ne.s32.totalorder %s87, %s103
      %p105 = scmp.eq.s32.totalorder %s39, 0
      %p106 = por %p104, %p105
      %s107 = ssub.s32 %s40, %s52
      %p108 = scmp.eq.s32.totalorder %s107, 0
      %s110 = sadd.s32 %s109, 1
      %s111 = scalar_select %p108, %s109, %s110
      %p114 = pneg %p108
      %p115 = scmp.eq.s32.totalorder %s33, 1
      %p116 = por %p114, %p115
      %p117 = scmp.ne.s32.totalorder %s109, %s112
      %p118 = scmp.eq.s32.totalorder %s33, 0
      %p119 = por %p117, %p118
      %p120 = scmp.ne.s32.totalorder %s109, %s112
      %p121 = scmp.eq.s32.totalorder %s38, 1
      %p122 = por %p120, %p121
      %p123 = scmp.ne.s32.totalorder %s112, %s113
      %p124 = scmp.eq.s32.totalorder %s38, 0
      %p125 = por %p123, %p124
      %p126 = scmp.ne.s32.totalorder %s112, %s113
      %p127 = scmp.eq.s32.totalorder %s39, 1
      %p128 = por %p126, %p127
      %p130 = scmp.ne.s32.totalorder %s113, %s129
      %p131 = scmp.eq.s32.totalorder %s39, 0
      %p132 = por %p130, %p131
      %s134 = sadd.s32 %s133, 1
      %p137 = scmp.eq.s32.totalorder %s33, 1
      %p138 = scmp.ne.s32.totalorder %s133, %s135
      %p139 = scmp.eq.s32.totalorder %s33, 0
      %p140 = por %p138, %p139
      %p141 = scmp.ne.s32.totalorder %s133, %s135
      %p142 = scmp.eq.s32.totalorder %s38, 1
      %p143 = por %p141, %p142
      %p144 = scmp.ne.s32.totalorder %s135, %s136
      %p145 = scmp.eq.s32.totalorder %s38, 0
      %p146 = por %p144, %p145
      %p147 = scmp.ne.s32.totalorder %s135, %s136
      %p148 = scmp.eq.s32.totalorder %s39, 1
      %p149 = por %p147, %p148
      %p151 = scmp.ne.s32.totalorder %s136, %s150
      %p152 = scmp.eq.s32.totalorder %s39, 0
      %p153 = por %p151, %p152
      %s155 = sadd.s32 %s154, 1
      %p158 = scmp.eq.s32.totalorder %s33, 1
      %p159 = scmp.ne.s32.totalorder %s154, %s156
      %p160 = scmp.eq.s32.totalorder %s33, 0
      %p161 = por %p159, %p160
      %p162 = scmp.ne.s32.totalorder %s154, %s156
      %p163 = scmp.eq.s32.totalorder %s38, 1
      %p164 = por %p162, %p163
      %p165 = scmp.ne.s32.totalorder %s156, %s157
      %p166 = scmp.eq.s32.totalorder %s38, 0
      %p167 = por %p165, %p166
      %p168 = scmp.ne.s32.totalorder %s156, %s157
      %p169 = scmp.eq.s32.totalorder %s39, 1
      %p170 = por %p168, %p169
      %p172 = scmp.ne.s32.totalorder %s157, %s171
      %p173 = scmp.eq.s32.totalorder %s39, 0
      %p174 = por %p172, %p173
      %s176 = sadd.s32 %s175, 1
      %p179 = scmp.eq.s32.totalorder %s33, 1
      %p180 = scmp.ne.s32.totalorder %s175, %s177
      %p181 = scmp.eq.s32.totalorder %s33, 0
      %p182 = por %p180, %p181
      %p183 = scmp.ne.s32.totalorder %s175, %s177
      %p184 = scmp.eq.s32.totalorder %s38, 1
      %p185 = por %p183, %p184
      %p186 = scmp.ne.s32.totalorder %s177, %s178
      %p187 = scmp.eq.s32.totalorder %s38, 0
      %p188 = por %p186, %p187
      %p189 = scmp.ne.s32.totalorder %s177, %s178
      %p190 = scmp.eq.s32.totalorder %s39, 1
      %p191 = por %p189, %p190
      %p193 = scmp.ne.s32.totalorder %s178, %s192
      %p194 = scmp.eq.s32.totalorder %s39, 0
      %p195 = por %p193, %p194
      %s197 = sadd.s32 %s196, 1
      %p200 = scmp.eq.s32.totalorder %s33, 1
      %p201 = scmp.ne.s32.totalorder %s196, %s198
      %p202 = scmp.eq.s32.totalorder %s33, 0
      %p203 = por %p201, %p202
      %p204 = scmp.ne.s32.totalorder %s196, %s198
      %p205 = scmp.eq.s32.totalorder %s38, 1
      %p206 = por %p204, %p205
      %p207 = scmp.ne.s32.totalorder %s198, %s199
      %p208 = scmp.eq.s32.totalorder %s38, 0
      %p209 = por %p207, %p208
      %p210 = scmp.ne.s32.totalorder %s198, %s199
      %p211 = scmp.eq.s32.totalorder %s39, 1
      %p212 = por %p210, %p211
      %p214 = scmp.ne.s32.totalorder %s199, %s213
      %p215 = scmp.eq.s32.totalorder %s39, 0
      %p216 = por %p214, %p215
      %s218 = sadd.s32 %s217, 1
      %p221 = scmp.eq.s32.totalorder %s33, 1
      %p222 = scmp.ne.s32.totalorder %s217, %s219
      %p223 = scmp.eq.s32.totalorder %s33, 0
      %p224 = por %p222, %p223
      %p225 = scmp.ne.s32.totalorder %s217, %s219
      %p226 = scmp.eq.s32.totalorder %s38, 1
      %p227 = por %p225, %p226
      %p228 = scmp.ne.s32.totalorder %s219, %s220
      %p229 = scmp.eq.s32.totalorder %s38, 0
      %p230 = por %p228, %p229
      %p231 = scmp.ne.s32.totalorder %s219, %s220
      %p232 = scmp.eq.s32.totalorder %s39, 1
      %p233 = por %p231, %p232
      %p235 = scmp.ne.s32.totalorder %s220, %s234
      %p236 = scmp.eq.s32.totalorder %s39, 0
      %p237 = por %p235, %p236
      %s239 = sadd.s32 %s238, 1
      %p242 = scmp.eq.s32.totalorder %s33, 1
      %p243 = scmp.ne.s32.totalorder %s238, %s240
      %p244 = scmp.eq.s32.totalorder %s33, 0
      %p245 = por %p243, %p244
      %p246 = scmp.ne.s32.totalorder %s238, %s240
      %p247 = scmp.eq.s32.totalorder %s38, 1
      %p248 = por %p246, %p247
      %p249 = scmp.ne.s32.totalorder %s240, %s241
      %p250 = scmp.eq.s32.totalorder %s38, 0
      %p251 = por %p249, %p250
      %p252 = scmp.ne.s32.totalorder %s240, %s241
      %p253 = scmp.eq.s32.totalorder %s39, 1
      %p254 = por %p252, %p253
      %p256 = scmp.ne.s32.totalorder %s241, %s255
      %p257 = scmp.eq.s32.totalorder %s39, 0
      %p258 = por %p256, %p257
      %s260 = sadd.s32 %s259, 1
      %p263 = scmp.eq.s32.totalorder %s33, 1
      %p264 = scmp.ne.s32.totalorder %s259, %s261
      %p265 = scmp.eq.s32.totalorder %s33, 0
      %p266 = por %p264, %p265
      %p267 = scmp.ne.s32.totalorder %s259, %s261
      %p268 = scmp.eq.s32.totalorder %s38, 1
      %p269 = por %p267, %p268
      %p270 = scmp.ne.s32.totalorder %s261, %s262
      %p271 = scmp.eq.s32.totalorder %s38, 0
      %p272 = por %p270, %p271
      %p273 = scmp.ne.s32.totalorder %s261, %s262
      %p274 = scmp.eq.s32.totalorder %s39, 1
      %p275 = por %p273, %p274
      %p277 = scmp.ne.s32.totalorder %s262, %s276
      %p278 = scmp.eq.s32.totalorder %s39, 0
      %p279 = por %p277, %p278
      %s281 = sadd.s32 %s280, 1
      %p284 = scmp.eq.s32.totalorder %s33, 1
      %p285 = scmp.ne.s32.totalorder %s280, %s282
      %p286 = scmp.eq.s32.totalorder %s33, 0
      %p287 = por %p285, %p286
      %p288 = scmp.ne.s32.totalorder %s280, %s282
      %p289 = scmp.eq.s32.totalorder %s38, 1
      %p290 = por %p288, %p289
      %p291 = scmp.ne.s32.totalorder %s282, %s283
      %p292 = scmp.eq.s32.totalorder %s38, 0
      %p293 = por %p291, %p292
      %p294 = scmp.ne.s32.totalorder %s282, %s283
      %p295 = scmp.eq.s32.totalorder %s39, 1
      %p296 = por %p294, %p295
      %p298 = scmp.ne.s32.totalorder %s283, %s297
      %p299 = scmp.eq.s32.totalorder %s39, 0
      %p300 = por %p298, %p299
      %s301 = ssub.s32 %s40, %s52
      %s302 = ssub.s32 %s41, %s48
      %s303 = sor.u32 %s301, %s302
      %p304 = scmp.eq.s32.totalorder %s303, 0
      %s306 = sadd.s32 %s305, 1
      %s307 = scalar_select %p304, %s305, %s306
      %p310 = pneg %p304
      %p311 = scmp.eq.s32.totalorder %s33, 1
      %p312 = por %p310, %p311
      %p313 = scmp.ne.s32.totalorder %s305, %s308
      %p314 = scmp.eq.s32.totalorder %s33, 0
      %p315 = por %p313, %p314
      %p316 = scmp.ne.s32.totalorder %s305, %s308
      %p317 = scmp.eq.s32.totalorder %s38, 1
      %p318 = por %p316, %p317
      %p319 = scmp.ne.s32.totalorder %s308, %s309
      %p320 = scmp.eq.s32.totalorder %s38, 0
      %p321 = por %p319, %p320
      %p322 = scmp.ne.s32.totalorder %s308, %s309
      %p323 = scmp.eq.s32.totalorder %s39, 1
      %p324 = por %p322, %p323
      %p326 = scmp.ne.s32.totalorder %s309, %s325
      %p327 = scmp.eq.s32.totalorder %s39, 0
      %p328 = por %p326, %p327
      %s329 = ssub.s32 %s40, %s52
      %s330 = ssub.s32 %s41, %s48
      %s331 = sor.u32 %s329, %s330
      %p332 = scmp.eq.s32.totalorder %s331, 0
      %s334 = sadd.s32 %s333, 1
      %s335 = scalar_select %p332, %s333, %s334
      %p338 = pneg %p332
      %p339 = scmp.eq.s32.totalorder %s33, 1
      %p340 = por %p338, %p339
      %p341 = scmp.ne.s32.totalorder %s333, %s336
      %p342 = scmp.eq.s32.totalorder %s33, 0
      %p343 = por %p341, %p342
      %p344 = scmp.ne.s32.totalorder %s333, %s336
      %p345 = scmp.eq.s32.totalorder %s38, 1
      %p346 = por %p344, %p345
      %p347 = scmp.ne.s32.totalorder %s336, %s337
      %p348 = scmp.eq.s32.totalorder %s38, 0
      %p349 = por %p347, %p348
      %p350 = scmp.ne.s32.totalorder %s336, %s337
      %p351 = scmp.eq.s32.totalorder %s39, 1
      %p352 = por %p350, %p351
      %p354 = scmp.ne.s32.totalorder %s337, %s353
      %p355 = scmp.eq.s32.totalorder %s39, 0
      %p356 = por %p354, %p355
      %p357 = scmp.le.s32.totalorder 1, %s33
      %p358 = scmp.lt.s32.totalorder %s33, 3
      %p359 = pnand %p357, %p358
      %p360 = pneg %p359
      // Predicated region
      $region9: #{tpu_custom_call.1} parent=5 // pred_check
        _
      $region10: #{tpu_custom_call.1} parent=5 // pred_check_branch
        %362 = sbr.rel (%p359) target = $region12
      $region11: #{tpu_custom_call.1} parent=5 // pred_region
        %s363 = ssub.s32 %s33, 1
        // Predicated region
        $region13: #{tpu_custom_call.1} parent=11 // pred_check
          %p364 = pneg %p146
        $region14: #{tpu_custom_call.1} parent=11 // pred_check_branch
          %366 = sbr.rel (%p364) target = $region16
        $region15: #{tpu_custom_call.1} parent=11 // pred_region
          %s368 = ssub.s32 512, 512
          %369 = vsyncadd [#allocation10], %s368
          %s370 = sshll.u32 [#allocation9], 4
          %s371 = int_to_ptr.vmem [resolvable:$true] %s370
          %376 = dma.hbm_to_vmem [thread:$0]  %s3, 512, %s371, [#allocation10], 128, 128, 8
        $region16: #{tpu_custom_call.1} parent=11 // pred_fallthru
          _
        // Predicated region
        $region17: #{tpu_custom_call.1} parent=11 // pred_check
          %p377 = pneg %p167
        $region18: #{tpu_custom_call.1} parent=11 // pred_check_branch
          %379 = sbr.rel (%p377) target = $region20
        $region19: #{tpu_custom_call.1} parent=11 // pred_region
          %s381 = ssub.s32 512, 512
          %382 = vsyncadd [#allocation10], %s381
          %s383 = sshll.u32 [#allocation11], 4
          %s384 = int_to_ptr.vmem [resolvable:$true] %s383
          %389 = dma.hbm_to_vmem [thread:$0]  %s4, 512, %s384, [#allocation10], 128, 128, 8
        $region20: #{tpu_custom_call.1} parent=11 // pred_fallthru
          _
        // Predicated region
        $region21: #{tpu_custom_call.1} parent=11 // pred_check
          %p390 = pneg %p188
        $region22: #{tpu_custom_call.1} parent=11 // pred_check_branch
          %392 = sbr.rel (%p390) target = $region24
        $region23: #{tpu_custom_call.1} parent=11 // pred_region
          %s394 = ssub.s32 512, 512
          %395 = vsyncadd [#allocation13], %s394
          %s396 = sshll.u32 [#allocation12], 4
          %s397 = int_to_ptr.vmem [resolvable:$true] %s396
          %402 = dma.hbm_to_vmem [thread:$0]  %s5, 512, %s397, [#allocation13], 128, 128, 8
        $region24: #{tpu_custom_call.1} parent=11 // pred_fallthru
          _
        // Predicated region
        $region25: #{tpu_custom_call.1} parent=11 // pred_check
          %p403 = pneg %p209
        $region26: #{tpu_custom_call.1} parent=11 // pred_check_branch
          %405 = sbr.rel (%p403) target = $region28
        $region27: #{tpu_custom_call.1} parent=11 // pred_region
          %s407 = ssub.s32 512, 512
          %408 = vsyncadd [#allocation13], %s407
          %s409 = sshll.u32 [#allocation14], 4
          %s410 = int_to_ptr.vmem [resolvable:$true] %s409
          %415 = dma.hbm_to_vmem [thread:$0]  %s6, 512, %s410, [#allocation13], 128, 128, 8
        $region28: #{tpu_custom_call.1} parent=11 // pred_fallthru
          _
        // Predicated region
        $region29: #{tpu_custom_call.1} parent=11 // pred_check
          %p416 = pneg %p230
        $region30: #{tpu_custom_call.1} parent=11 // pred_check_branch
          %418 = sbr.rel (%p416) target = $region32
        $region31: #{tpu_custom_call.1} parent=11 // pred_region
          _
        $region32: #{tpu_custom_call.1} parent=11 // pred_fallthru
          _
        // Predicated region
        $region33: #{tpu_custom_call.1} parent=11 // pred_check
          %p419 = pneg %p251
        $region34: #{tpu_custom_call.1} parent=11 // pred_check_branch
          %421 = sbr.rel (%p419) target = $region36
        $region35: #{tpu_custom_call.1} parent=11 // pred_region
          _
        $region36: #{tpu_custom_call.1} parent=11 // pred_fallthru
          _
        // Predicated region
        $region37: #{tpu_custom_call.1} parent=11 // pred_check
          %p422 = pneg %p272
        $region38: #{tpu_custom_call.1} parent=11 // pred_check_branch
          %424 = sbr.rel (%p422) target = $region40
        $region39: #{tpu_custom_call.1} parent=11 // pred_region
          _
        $region40: #{tpu_custom_call.1} parent=11 // pred_fallthru
          _
        // Predicated region
        $region41: #{tpu_custom_call.1} parent=11 // pred_check
          %p425 = pneg %p293
        $region42: #{tpu_custom_call.1} parent=11 // pred_check_branch
          %427 = sbr.rel (%p425) target = $region44
        $region43: #{tpu_custom_call.1} parent=11 // pred_region
          _
        $region44: #{tpu_custom_call.1} parent=11 // pred_fallthru
          _
      $region12: #{tpu_custom_call.1} parent=5 // pred_fallthru
        _
      %p428 = scmp.lt.s32.totalorder %s33, 2
      // Predicated region
      $region45: #{tpu_custom_call.1} parent=5 // pred_check
        %p429 = pneg %p428
      $region46: #{tpu_custom_call.1} parent=5 // pred_check_branch
        %431 = sbr.rel (%p429) target = $region48
      $region47: #{tpu_custom_call.1} parent=5 // pred_region
        // Predicated region
        $region49: #{tpu_custom_call.1} parent=47 // pred_check
          %p432 = pneg %p67
        $region50: #{tpu_custom_call.1} parent=47 // pred_check_branch
          %434 = sbr.rel (%p432) target = $region52
        $region51: #{tpu_custom_call.1} parent=47 // pred_region
          %s435 = sand.u32 %s57, 1
          %s436 = scalar_lea.sflag [#allocation4], %s435
          %s437 = sand.u32 %s57, 1
          %s438 = smul.addr %s437, 8
          %s439 = scalar_lea.vmem [#allocation3], %s438
          %s441 = ssub.s32 128, 128
          %442 = vsyncadd %s436, %s441
          %s443 = sadd.s32 %s41, %s40
          %s444 = smul.addr %s443, 64
          %s445 = scalar_lea.hbm %s0, %s444
          %s446 = sshll.u32 %s439, 4
          %s447 = int_to_ptr.vmem [resolvable:$true] %s446
          %452 = dma.hbm_to_vmem [thread:$0]  %s445, 128, %s447, %s436, 128, 64, 4
        $region52: #{tpu_custom_call.1} parent=47 // pred_fallthru
          _
        // Predicated region
        $region53: #{tpu_custom_call.1} parent=47 // pred_check
          %p453 = pneg %p93
        $region54: #{tpu_custom_call.1} parent=47 // pred_check_branch
          %455 = sbr.rel (%p453) target = $region56
        $region55: #{tpu_custom_call.1} parent=47 // pred_region
          %s456 = sand.u32 %s33, 1
          %s457 = scalar_lea.sflag [#allocation7], %s456
          %s458 = sand.u32 %s83, 1
          %s459 = smul.addr %s458, 8
          %s460 = scalar_lea.vmem [#allocation6], %s459
          %s462 = ssub.s32 128, 128
          %463 = vsyncadd %s457, %s462
          %s464 = smul.addr %s40, 64
          %s465 = scalar_lea.hbm %s1, %s464
          %s466 = sshll.u32 %s460, 4
          %s467 = int_to_ptr.vmem [resolvable:$true] %s466
          %472 = dma.hbm_to_vmem [thread:$0]  %s465, 128, %s467, %s457, 128, 64, 4
        $region56: #{tpu_custom_call.1} parent=47 // pred_fallthru
          _
        // Predicated region
        $region57: #{tpu_custom_call.1} parent=47 // pred_check
          %p473 = pneg %p119
        $region58: #{tpu_custom_call.1} parent=47 // pred_check_branch
          %475 = sbr.rel (%p473) target = $region60
        $region59: #{tpu_custom_call.1} parent=47 // pred_region
          %s476 = sand.u32 %s33, 1
          %s477 = scalar_lea.sflag [#allocation7], %s476
          %s478 = sand.u32 %s109, 1
          %s479 = smul.addr %s478, 8
          %s480 = scalar_lea.vmem [#allocation8], %s479
          %s482 = ssub.s32 128, 128
          %483 = vsyncadd %s477, %s482
          %s484 = smul.addr %s40, 64
          %s485 = scalar_lea.hbm %s2, %s484
          %s486 = sshll.u32 %s480, 4
          %s487 = int_to_ptr.vmem [resolvable:$true] %s486
          %492 = dma.hbm_to_vmem [thread:$0]  %s485, 128, %s487, %s477, 128, 64, 4
        $region60: #{tpu_custom_call.1} parent=47 // pred_fallthru
          _
      $region48: #{tpu_custom_call.1} parent=5 // pred_fallthru
        _
      %p493 = scmp.le.s32.totalorder 1, %s33
      %p494 = scmp.lt.s32.totalorder %s33, 3
      %p495 = pnand %p493, %p494
      %p496 = pneg %p495
      // Predicated region
      $region61: #{tpu_custom_call.1} parent=5 // pred_check
        _
      $region62: #{tpu_custom_call.1} parent=5 // pred_check_branch
        %498 = sbr.rel (%p495) target = $region64
      $region63: #{tpu_custom_call.1} parent=5 // pred_region
        %s499 = ssub.s32 %s33, 1
        %s500 = sand.u32 %s60, 1
        %s501 = scalar_lea.sflag [#allocation4], %s500
        %s502 = sand.u32 %s60, 1
        %s503 = smul.addr %s502, 8
        %s504 = scalar_lea.vmem [#allocation3], %s503
        // Predicated region
        $region65: #{tpu_custom_call.1} parent=63 // pred_check
          %p505 = pneg %p73
        $region66: #{tpu_custom_call.1} parent=63 // pred_check_branch
          %507 = sbr.rel (%p505) target = $region68
        $region67: #{tpu_custom_call.1} parent=63 // pred_region
          %508 = dma.done %s501, 128
        $region68: #{tpu_custom_call.1} parent=63 // pred_fallthru
          _
        %s509 = sand.u32 %s38, 1
        %s510 = scalar_lea.sflag [#allocation7], %s509
        %s511 = sand.u32 %s86, 1
        %s512 = smul.addr %s511, 8
        %s513 = scalar_lea.vmem [#allocation6], %s512
        // Predicated region
        $region69: #{tpu_custom_call.1} parent=63 // pred_check
          %p514 = pneg %p99
        $region70: #{tpu_custom_call.1} parent=63 // pred_check_branch
          %516 = sbr.rel (%p514) target = $region72
        $region71: #{tpu_custom_call.1} parent=63 // pred_region
          %517 = dma.done %s510, 128
        $region72: #{tpu_custom_call.1} parent=63 // pred_fallthru
          _
        %s518 = sand.u32 %s38, 1
        %s519 = scalar_lea.sflag [#allocation7], %s518
        %s520 = sand.u32 %s112, 1
        %s521 = smul.addr %s520, 8
        %s522 = scalar_lea.vmem [#allocation8], %s521
        // Predicated region
        $region73: #{tpu_custom_call.1} parent=63 // pred_check
          %p523 = pneg %p125
        $region74: #{tpu_custom_call.1} parent=63 // pred_check_branch
          %525 = sbr.rel (%p523) target = $region76
        $region75: #{tpu_custom_call.1} parent=63 // pred_region
          %526 = dma.done %s519, 128
        $region76: #{tpu_custom_call.1} parent=63 // pred_fallthru
          _
        // Predicated region
        $region77: #{tpu_custom_call.1} parent=63 // pred_check
          %p527 = pneg %p146
        $region78: #{tpu_custom_call.1} parent=63 // pred_check_branch
          %529 = sbr.rel (%p527) target = $region80
        $region79: #{tpu_custom_call.1} parent=63 // pred_region
          %530 = dma.done [#allocation10], 512
        $region80: #{tpu_custom_call.1} parent=63 // pred_fallthru
          _
        // Predicated region
        $region81: #{tpu_custom_call.1} parent=63 // pred_check
          %p531 = pneg %p167
        $region82: #{tpu_custom_call.1} parent=63 // pred_check_branch
          %533 = sbr.rel (%p531) target = $region84
        $region83: #{tpu_custom_call.1} parent=63 // pred_region
          %534 = dma.done [#allocation10], 512
        $region84: #{tpu_custom_call.1} parent=63 // pred_fallthru
          _
        // Predicated region
        $region85: #{tpu_custom_call.1} parent=63 // pred_check
          %p535 = pneg %p188
        $region86: #{tpu_custom_call.1} parent=63 // pred_check_branch
          %537 = sbr.rel (%p535) target = $region88
        $region87: #{tpu_custom_call.1} parent=63 // pred_region
          %538 = dma.done [#allocation13], 512
        $region88: #{tpu_custom_call.1} parent=63 // pred_fallthru
          _
        // Predicated region
        $region89: #{tpu_custom_call.1} parent=63 // pred_check
          %p539 = pneg %p209
        $region90: #{tpu_custom_call.1} parent=63 // pred_check_branch
          %541 = sbr.rel (%p539) target = $region92
        $region91: #{tpu_custom_call.1} parent=63 // pred_region
          %542 = dma.done [#allocation13], 512
        $region92: #{tpu_custom_call.1} parent=63 // pred_fallthru
          _
        %s543 = sand.u32 %s60, 1
        %s544 = scalar_lea.sflag [#allocation4], %s543
        %s545 = sand.u32 %s60, 1
        %s546 = smul.addr %s545, 8
        %s547 = scalar_lea.vmem [#allocation3], %s546
        %p548 = pneg %p73
        %p549 = pneg %p70
        %s550 = sand.u32 %s38, 1
        %s551 = scalar_lea.sflag [#allocation7], %s550
        %s552 = sand.u32 %s86, 1
        %s553 = smul.addr %s552, 8
        %s554 = scalar_lea.vmem [#allocation6], %s553
        %p555 = pneg %p99
        %p556 = pneg %p96
        %s557 = sand.u32 %s38, 1
        %s558 = scalar_lea.sflag [#allocation7], %s557
        %s559 = sand.u32 %s112, 1
        %s560 = smul.addr %s559, 8
        %s561 = scalar_lea.vmem [#allocation8], %s560
        %p562 = pneg %p125
        %p563 = pneg %p122
        %p564 = pneg %p146
        %p565 = pneg %p143
        %p566 = pneg %p167
        %p567 = pneg %p164
        %p568 = pneg %p188
        %p569 = pneg %p185
        %p570 = pneg %p209
        %p571 = pneg %p206
        %p572 = pneg %p230
        %p573 = pneg %p227
        %p574 = pneg %p251
        %p575 = pneg %p248
        %p576 = pneg %p272
        %p577 = pneg %p269
        %p578 = pneg %p293
        %p579 = pneg %p290
        %p580 = pneg %p321
        %p581 = pneg %p318
        %s582 = sand.u32 %s308, 1
        %s583 = scalar_lea.sflag [#allocation5], %s582
        %s584 = sand.u32 %s308, 1
        %s585 = smul.addr %s584, 8
        %s586 = scalar_lea.vmem [#allocation15], %s585
        %p587 = pneg %p349
        %p588 = pneg %p346
        %s589 = sand.u32 %s336, 1
        %s590 = scalar_lea.sflag [#allocation17], %s589
        %s591 = sand.u32 %s336, 1
        %s592 = smul.addr %s591, 32
        %s593 = scalar_lea.vmem [#allocation16], %s592
        %v595 = vld [vmem:[%s504] sm:$0xf]
        %v596 = vld [vmem:[%s504 + $0x4] sm:$0xf]
        %v597 = vpack.c.bf16 %v595, %v595
        %v598 = vpack.c.bf16 %v596, %v596
        %v599 = vld [vmem:[%s513] sm:$0xf]
        %v600 = vld [vmem:[%s513 + $0x4] sm:$0xf]
        %v601 = vpack.c.bf16 %v599, %v599
        %v602 = vpack.c.bf16 %v600, %v600
        %v603 = vld [vmem:[%s522] sm:$0xf]
        %v604 = vld [vmem:[%s522 + $0x4] sm:$0xf]
        %v605 = vpack.c.bf16 %v603, %v603
        %v606 = vpack.c.bf16 %v604, %v604
        %v607 = vld [vmem:[#allocation9] sm:$0xff]
        %v608 = vld [vmem:[#allocation9 + $0x8] sm:$0xff]
        %v609 = vld [vmem:[#allocation9 + $0x10] sm:$0xff]
        %v610 = vld [vmem:[#allocation9 + $0x18] sm:$0xff]
        %v611 = vpack.c.bf16 %v608, %v607
        %v612 = vpack.c.bf16 %v610, %v609
        %v613 = vld [vmem:[#allocation11] sm:$0xff]
        %v614 = vld [vmem:[#allocation11 + $0x8] sm:$0xff]
        %v615 = vld [vmem:[#allocation11 + $0x10] sm:$0xff]
        %v616 = vld [vmem:[#allocation11 + $0x18] sm:$0xff]
        %v617 = vpack.c.bf16 %v614, %v613
        %v618 = vpack.c.bf16 %v616, %v615
        %v619 = vld [vmem:[#allocation12] sm:$0xff]
        %v620 = vld [vmem:[#allocation12 + $0x8] sm:$0xff]
        %v621 = vld [vmem:[#allocation12 + $0x10] sm:$0xff]
        %v622 = vld [vmem:[#allocation12 + $0x18] sm:$0xff]
        %v623 = vpack.c.bf16 %v620, %v619
        %v624 = vpack.c.bf16 %v622, %v621
        %v625 = vld [vmem:[#allocation14] sm:$0xff]
        %v626 = vld [vmem:[#allocation14 + $0x8] sm:$0xff]
        %v627 = vld [vmem:[#allocation14 + $0x10] sm:$0xff]
        %v628 = vld [vmem:[#allocation14 + $0x18] sm:$0xff]
        %v629 = vpack.c.bf16 %v626, %v625
        %v630 = vpack.c.bf16 %v628, %v627
        %v631 = vld [vmem:[%s7] sm:$0x1]
        %v633 = vlaneseq
        %v634 = vshrl.u32 %v633, 7
        %v635 = vsub.s32 0, %v634
        %v636 = vrot.slane %v631, %v635
        %v639 = vcombine.low %v597, %v598
        %v641 = vunpack.c.l.s4 1983009808
        %v642 = vunpack.c.0.s8 %v641
        %v643 = vlaneseq
        %v644 = vshrl.u32 %v643, 7
        %v645 = vsub.s32 %v642, %v644
        %v646 = vrot.slane %v639, %v645
        %v647 = vcombine.low %v636, %v636
        %vm649 = vcmask 261120
        %v651 = vsel %vm649, %v646, 0
        %v654 = vsel %vm649, %v611, 0
        %v657 = vsel %vm649, %v612, 0
        %659 = vmatprep.subr.bf16.mxu0 0
        %660 = vmatpush1.bf16.xpose.msra.mxu0 0
        %661 = vmatprep.subr.bf16.mxu0 0
        %662 = vmatpush1.bf16.xpose.msra.mxu0 0
        %663 = vmatprep.subr.bf16.mxu0 0
        %664 = vmatpush1.bf16.xpose.msra.mxu0 0
        %665 = vmatprep.subr.bf16.mxu0 0
        %666 = vmatpush1.bf16.xpose.msra.mxu0 0
        %667 = vmatprep.subr.bf16.mxu0 0
        %668 = vmatpush1.bf16.xpose.msra.mxu0 0
        %669 = vmatprep.subr.bf16.mxu0 0
        %670 = vmatpush1.bf16.xpose.msra.mxu0 0
        %671 = vmatprep.subr.bf16.mxu0 0
        %672 = vmatpush1.bf16.xpose.msra.mxu0 %v657
        %673 = vmatprep.subr.bf16.mxu0 0
        %674 = vmatpush1.bf16.xpose.msra.mxu0 %v654
        %675 = vmatprep.subr.bf16.mxu0 0
        %676 = vmatpush2.bf16.xpose.msra.mxu0 0
        %677 = vmatprep.subr.bf16.mxu0 0
        %678 = vmatpush2.bf16.xpose.msra.mxu0 0
        %679 = vmatprep.subr.bf16.mxu0 0
        %680 = vmatpush2.bf16.xpose.msra.mxu0 0
        %681 = vmatprep.subr.bf16.mxu0 0
        %682 = vmatpush2.bf16.xpose.msra.mxu0 0
        %683 = vmatprep.subr.bf16.mxu0 0
        %684 = vmatpush2.bf16.xpose.msra.mxu0 0
        %685 = vmatprep.subr.bf16.mxu0 0
        %686 = vmatpush2.bf16.xpose.msra.mxu0 0
        %687 = vmatprep.subr.bf16.mxu0 0
        %688 = vmatpush2.bf16.xpose.msra.mxu0 0
        %689 = vmatprep.subr.bf16.mxu0 0
        %690 = vmatpush2.bf16.xpose.msra.mxu0 0
        %691 = vmatprep.mubr.bf16.mxu0 0
        %692 = vmatmul.mubr.bf16.gmra.mxu0 %v651
        %v693 = vpop.f32.mrf.mxu0
        %v694 = vadd.f32 %v647, %v693
        %v695 = vpop.f32.mrf.mxu0
        %v696 = vpop.f32.mrf.mxu0
        %v697 = vpop.f32.mrf.mxu0
        %698 = vdwg.mxu0
        %v700 = vcombine.high %v694, %v694
        %v702 = vld [vmem:[%s8] sm:$0x1]
        %v704 = vlaneseq
        %v705 = vshrl.u32 %v704, 7
        %v706 = vsub.s32 0, %v705
        %v707 = vrot.slane %v702, %v706
        %v710 = vcombine.low %v601, %v602
        %v712 = vunpack.c.l.s4 1983009808
        %v713 = vunpack.c.0.s8 %v712
        %v714 = vlaneseq
        %v715 = vshrl.u32 %v714, 7
        %v716 = vsub.s32 %v713, %v715
        %v717 = vrot.slane %v710, %v716
        %v718 = vcombine.low %v707, %v707
        %v721 = vsel %vm649, %v717, 0
        %v724 = vsel %vm649, %v617, 0
        %v727 = vsel %vm649, %v618, 0
        %729 = vmatprep.subr.bf16.mxu0 0
        %730 = vmatpush1.bf16.xpose.msra.mxu0 0
        %731 = vmatprep.subr.bf16.mxu0 0
        %732 = vmatpush1.bf16.xpose.msra.mxu0 0
        %733 = vmatprep.subr.bf16.mxu0 0
        %734 = vmatpush1.bf16.xpose.msra.mxu0 0
        %735 = vmatprep.subr.bf16.mxu0 0
        %736 = vmatpush1.bf16.xpose.msra.mxu0 0
        %737 = vmatprep.subr.bf16.mxu0 0
        %738 = vmatpush1.bf16.xpose.msra.mxu0 0
        %739 = vmatprep.subr.bf16.mxu0 0
        %740 = vmatpush1.bf16.xpose.msra.mxu0 0
        %741 = vmatprep.subr.bf16.mxu0 0
        %742 = vmatpush1.bf16.xpose.msra.mxu0 %v727
        %743 = vmatprep.subr.bf16.mxu0 0
        %744 = vmatpush1.bf16.xpose.msra.mxu0 %v724
        %745 = vmatprep.subr.bf16.mxu0 0
        %746 = vmatpush2.bf16.xpose.msra.mxu0 0
        %747 = vmatprep.subr.bf16.mxu0 0
        %748 = vmatpush2.bf16.xpose.msra.mxu0 0
        %749 = vmatprep.subr.bf16.mxu0 0
        %750 = vmatpush2.bf16.xpose.msra.mxu0 0
        %751 = vmatprep.subr.bf16.mxu0 0
        %752 = vmatpush2.bf16.xpose.msra.mxu0 0
        %753 = vmatprep.subr.bf16.mxu0 0
        %754 = vmatpush2.bf16.xpose.msra.mxu0 0
        %755 = vmatprep.subr.bf16.mxu0 0
        %756 = vmatpush2.bf16.xpose.msra.mxu0 0
        %757 = vmatprep.subr.bf16.mxu0 0
        %758 = vmatpush2.bf16.xpose.msra.mxu0 0
        %759 = vmatprep.subr.bf16.mxu0 0
        %760 = vmatpush2.bf16.xpose.msra.mxu0 0
        %761 = vmatprep.mubr.bf16.mxu0 0
        %762 = vmatmul.mubr.bf16.gmra.mxu0 %v721
        %v763 = vpop.f32.mrf.mxu0
        %v764 = vadd.f32 %v718, %v763
        %v765 = vpop.f32.mrf.mxu0
        %v766 = vpop.f32.mrf.mxu0
        %v767 = vpop.f32.mrf.mxu0
        %768 = vdwg.mxu0
        %v770 = vcombine.high %v764, %v764
        %v772 = vld [vmem:[%s9] sm:$0x1]
        %v774 = vlaneseq
        %v775 = vshrl.u32 %v774, 7
        %v776 = vsub.s32 0, %v775
        %v777 = vrot.slane %v772, %v776
        %v780 = vcombine.low %v605, %v606
        %v782 = vunpack.c.l.s4 1983009808
        %v783 = vunpack.c.0.s8 %v782
        %v784 = vlaneseq
        %v785 = vshrl.u32 %v784, 7
        %v786 = vsub.s32 %v783, %v785
        %v787 = vrot.slane %v780, %v786
        %v788 = vcombine.low %v777, %v777
        %v791 = vsel %vm649, %v787, 0
        %v794 = vsel %vm649, %v623, 0
        %v797 = vsel %vm649, %v624, 0
        %799 = vmatprep.subr.bf16.mxu0 0
        %800 = vmatpush1.bf16.xpose.msra.mxu0 0
        %801 = vmatprep.subr.bf16.mxu0 0
        %802 = vmatpush1.bf16.xpose.msra.mxu0 0
        %803 = vmatprep.subr.bf16.mxu0 0
        %804 = vmatpush1.bf16.xpose.msra.mxu0 0
        %805 = vmatprep.subr.bf16.mxu0 0
        %806 = vmatpush1.bf16.xpose.msra.mxu0 0
        %807 = vmatprep.subr.bf16.mxu0 0
        %808 = vmatpush1.bf16.xpose.msra.mxu0 0
        %809 = vmatprep.subr.bf16.mxu0 0
        %810 = vmatpush1.bf16.xpose.msra.mxu0 0
        %811 = vmatprep.subr.bf16.mxu0 0
        %812 = vmatpush1.bf16.xpose.msra.mxu0 %v797
        %813 = vmatprep.subr.bf16.mxu0 0
        %814 = vmatpush1.bf16.xpose.msra.mxu0 %v794
        %815 = vmatprep.subr.bf16.mxu0 0
        %816 = vmatpush2.bf16.xpose.msra.mxu0 0
        %817 = vmatprep.subr.bf16.mxu0 0
        %818 = vmatpush2.bf16.xpose.msra.mxu0 0
        %819 = vmatprep.subr.bf16.mxu0 0
        %820 = vmatpush2.bf16.xpose.msra.mxu0 0
        %821 = vmatprep.subr.bf16.mxu0 0
        %822 = vmatpush2.bf16.xpose.msra.mxu0 0
        %823 = vmatprep.subr.bf16.mxu0 0
        %824 = vmatpush2.bf16.xpose.msra.mxu0 0
        %825 = vmatprep.subr.bf16.mxu0 0
        %826 = vmatpush2.bf16.xpose.msra.mxu0 0
        %827 = vmatprep.subr.bf16.mxu0 0
        %828 = vmatpush2.bf16.xpose.msra.mxu0 0
        %829 = vmatprep.subr.bf16.mxu0 0
        %830 = vmatpush2.bf16.xpose.msra.mxu0 0
        %831 = vmatprep.mubr.bf16.mxu0 0
        %832 = vmatmul.mubr.bf16.gmra.mxu0 %v791
        %v833 = vpop.f32.mrf.mxu0
        %v834 = vadd.f32 %v788, %v833
        %v835 = vpop.f32.mrf.mxu0
        %v836 = vpop.f32.mrf.mxu0
        %v837 = vpop.f32.mrf.mxu0
        %838 = vdwg.mxu0
        %v840 = vcombine.high %v834, %v834
        %v842 = vpack.c.bf16 %v694, %v694
        %v843 = vpack.c.bf16 %v700, %v700
        %v844 = vpack.c.bf16 %v764, %v764
        %v845 = vpack.c.bf16 %v770, %v770
        %v846 = vpack.c.bf16 %v834, %v834
        %v847 = vpack.c.bf16 %v840, %v840
        %vm848 = vcmask 64512
        %v850 = vsel %vm848, %v842, 0
        %v853 = vsel %vm848, %v844, 0
        %855 = vmatprep.subr.bf16.mxu0 0
        %856 = vmatpush1.bf16.xpose.msra.mxu0 0
        %857 = vmatprep.subr.bf16.mxu0 0
        %858 = vmatpush1.bf16.xpose.msra.mxu0 0
        %859 = vmatprep.subr.bf16.mxu0 0
        %860 = vmatpush1.bf16.xpose.msra.mxu0 0
        %861 = vmatprep.subr.bf16.mxu0 0
        %862 = vmatpush1.bf16.xpose.msra.mxu0 0
        %863 = vmatprep.subr.bf16.mxu0 0
        %864 = vmatpush1.bf16.xpose.msra.mxu0 0
        %865 = vmatprep.subr.bf16.mxu0 0
        %866 = vmatpush1.bf16.xpose.msra.mxu0 0
        %867 = vmatprep.subr.bf16.mxu0 0
        %868 = vmatpush1.bf16.xpose.msra.mxu0 0
        %869 = vmatprep.subr.bf16.mxu0 0
        %870 = vmatpush1.bf16.xpose.msra.mxu0 %v853
        %871 = vmatprep.subr.bf16.mxu0 0
        %872 = vmatpush2.bf16.xpose.msra.mxu0 0
        %873 = vmatprep.subr.bf16.mxu0 0
        %874 = vmatpush2.bf16.xpose.msra.mxu0 0
        %875 = vmatprep.subr.bf16.mxu0 0
        %876 = vmatpush2.bf16.xpose.msra.mxu0 0
        %877 = vmatprep.subr.bf16.mxu0 0
        %878 = vmatpush2.bf16.xpose.msra.mxu0 0
        %879 = vmatprep.subr.bf16.mxu0 0
        %880 = vmatpush2.bf16.xpose.msra.mxu0 0
        %881 = vmatprep.subr.bf16.mxu0 0
        %882 = vmatpush2.bf16.xpose.msra.mxu0 0
        %883 = vmatprep.subr.bf16.mxu0 0
        %884 = vmatpush2.bf16.xpose.msra.mxu0 0
        %885 = vmatprep.subr.bf16.mxu0 0
        %886 = vmatpush2.bf16.xpose.msra.mxu0 0
        %887 = vmatprep.mubr.bf16.mxu0 0
        %888 = vmatmul.mubr.bf16.gmra.mxu0 %v850
        %v889 = vpop.f32.mrf.mxu0
        %v890 = vadd.f32 0.0, %v889
        %v891 = vpop.f32.mrf.mxu0
        %v892 = vpop.f32.mrf.mxu0
        %v893 = vpop.f32.mrf.mxu0
        %894 = vdwg.mxu0
        %v896 = vsel %vm848, %v843, 0
        %v899 = vsel %vm848, %v845, 0
        %901 = vmatprep.subr.bf16.mxu0 0
        %902 = vmatpush1.bf16.xpose.msra.mxu0 0
        %903 = vmatprep.subr.bf16.mxu0 0
        %904 = vmatpush1.bf16.xpose.msra.mxu0 0
        %905 = vmatprep.subr.bf16.mxu0 0
        %906 = vmatpush1.bf16.xpose.msra.mxu0 0
        %907 = vmatprep.subr.bf16.mxu0 0
        %908 = vmatpush1.bf16.xpose.msra.mxu0 0
        %909 = vmatprep.subr.bf16.mxu0 0
        %910 = vmatpush1.bf16.xpose.msra.mxu0 0
        %911 = vmatprep.subr.bf16.mxu0 0
        %912 = vmatpush1.bf16.xpose.msra.mxu0 0
        %913 = vmatprep.subr.bf16.mxu0 0
        %914 = vmatpush1.bf16.xpose.msra.mxu0 0
        %915 = vmatprep.subr.bf16.mxu0 0
        %916 = vmatpush1.bf16.xpose.msra.mxu0 %v899
        %917 = vmatprep.subr.bf16.mxu0 0
        %918 = vmatpush2.bf16.xpose.msra.mxu0 0
        %919 = vmatprep.subr.bf16.mxu0 0
        %920 = vmatpush2.bf16.xpose.msra.mxu0 0
        %921 = vmatprep.subr.bf16.mxu0 0
        %922 = vmatpush2.bf16.xpose.msra.mxu0 0
        %923 = vmatprep.subr.bf16.mxu0 0
        %924 = vmatpush2.bf16.xpose.msra.mxu0 0
        %925 = vmatprep.subr.bf16.mxu0 0
        %926 = vmatpush2.bf16.xpose.msra.mxu0 0
        %927 = vmatprep.subr.bf16.mxu0 0
        %928 = vmatpush2.bf16.xpose.msra.mxu0 0
        %929 = vmatprep.subr.bf16.mxu0 0
        %930 = vmatpush2.bf16.xpose.msra.mxu0 0
        %931 = vmatprep.subr.bf16.mxu0 0
        %932 = vmatpush2.bf16.xpose.msra.mxu0 0
        %933 = vmatprep.mubr.bf16.mxu0 0
        %934 = vmatmul.mubr.bf16.gmra.mxu0 %v896
        %v935 = vpop.f32.mrf.mxu0
        %v936 = vadd.f32 0.0, %v935
        %v937 = vpop.f32.mrf.mxu0
        %v938 = vpop.f32.mrf.mxu0
        %v939 = vpop.f32.mrf.mxu0
        %940 = vdwg.mxu0
        %vm941 = vcmask 27648
        %v942 = vsel %vm941, %v890, -inf
        %943 = vmax.xlane.f32.xlu0 %v942
        %v944 = vpop.xlane.xlu0 %943
        %v945 = vsel %vm941, %v936, -inf
        %946 = vmax.xlane.f32.xlu0 %v945
        %v947 = vpop.xlane.xlu0 %946
        %v948 = vsub.f32 %v890, %v944
        %v949 = vsub.f32 %v936, %v947
        %v950 = vmul.f32 %v948, 1.442695
        %v951 = vpow.pop %v950
        %v952 = vmul.f32 %v949, 1.442695
        %v953 = vpow.pop %v952
        %v954 = vsel %vm941, %v951, 0.0
        %955 = vadd.xlane.f32.xlu0 %v954
        %v956 = vpop.xlane.xlu0 %955
        %v957 = vsel %vm941, %v953, 0.0
        %958 = vadd.xlane.f32.xlu0 %v957
        %v959 = vpop.xlane.xlu0 %958
        %v960 = vrcp.pop %v956
        %v961 = vrcp.pop %v959
        %v962 = vmul.f32 %v951, %v960
        %v963 = vmul.f32 %v953, %v961
        %964 = vst.msk [vmem:[%s593] sm:$0xf] %vm941, %v962
        %965 = vst.msk [vmem:[%s593 + $0x10] sm:$0xf] %vm941, %v963
        %v966 = vpack.c.bf16 %v962, %v962
        %v967 = vpack.c.bf16 %v963, %v963
        %vm968 = vcmask 31744
        %v970 = vsel %vm968, %v966, 0
        %vm972 = vcmask 1041408
        %v974 = vsel %vm972, %v846, 0
        %976 = vmatprep.subr.bf16.mxu0 0
        %977 = vmatpush1.bf16.msra.mxu0 0
        %978 = vmatprep.subr.bf16.mxu0 0
        %979 = vmatpush1.bf16.msra.mxu0 0
        %980 = vmatprep.subr.bf16.mxu0 0
        %981 = vmatpush1.bf16.msra.mxu0 0
        %982 = vmatprep.subr.bf16.mxu0 0
        %983 = vmatpush1.bf16.msra.mxu0 0
        %984 = vmatprep.subr.bf16.mxu0 0
        %985 = vmatpush1.bf16.msra.mxu0 0
        %986 = vmatprep.subr.bf16.mxu0 0
        %987 = vmatpush1.bf16.msra.mxu0 0
        %988 = vmatprep.subr.bf16.mxu0 0
        %989 = vmatpush1.bf16.msra.mxu0 0
        %990 = vmatprep.subr.bf16.mxu0 0
        %991 = vmatpush1.bf16.msra.mxu0 %v974
        %992 = vmatprep.subr.bf16.mxu0 0
        %993 = vmatpush2.bf16.msra.mxu0 0
        %994 = vmatprep.subr.bf16.mxu0 0
        %995 = vmatpush2.bf16.msra.mxu0 0
        %996 = vmatprep.subr.bf16.mxu0 0
        %997 = vmatpush2.bf16.msra.mxu0 0
        %998 = vmatprep.subr.bf16.mxu0 0
        %999 = vmatpush2.bf16.msra.mxu0 0
        %1000 = vmatprep.subr.bf16.mxu0 0
        %1001 = vmatpush2.bf16.msra.mxu0 0
        %1002 = vmatprep.subr.bf16.mxu0 0
        %1003 = vmatpush2.bf16.msra.mxu0 0
        %1004 = vmatprep.subr.bf16.mxu0 0
        %1005 = vmatpush2.bf16.msra.mxu0 0
        %1006 = vmatprep.subr.bf16.mxu0 0
        %1007 = vmatpush2.bf16.msra.mxu0 0
        %1008 = vmatprep.mubr.bf16.mxu0 0
        %1009 = vmatmul.mubr.bf16.gmra.mxu0 %v970
        %v1010 = vpop.f32.mrf.mxu0
        %v1011 = vadd.f32 0.0, %v1010
        %v1012 = vpop.f32.mrf.mxu0
        %v1013 = vpop.f32.mrf.mxu0
        %v1014 = vpop.f32.mrf.mxu0
        %1015 = vdwg.mxu0
        %v1017 = vsel %vm968, %v967, 0
        %v1020 = vsel %vm972, %v847, 0
        %1022 = vmatprep.subr.bf16.mxu0 0
        %1023 = vmatpush1.bf16.msra.mxu0 0
        %1024 = vmatprep.subr.bf16.mxu0 0
        %1025 = vmatpush1.bf16.msra.mxu0 0
        %1026 = vmatprep.subr.bf16.mxu0 0
        %1027 = vmatpush1.bf16.msra.mxu0 0
        %1028 = vmatprep.subr.bf16.mxu0 0
        %1029 = vmatpush1.bf16.msra.mxu0 0
        %1030 = vmatprep.subr.bf16.mxu0 0
        %1031 = vmatpush1.bf16.msra.mxu0 0
        %1032 = vmatprep.subr.bf16.mxu0 0
        %1033 = vmatpush1.bf16.msra.mxu0 0
        %1034 = vmatprep.subr.bf16.mxu0 0
        %1035 = vmatpush1.bf16.msra.mxu0 0
        %1036 = vmatprep.subr.bf16.mxu0 0
        %1037 = vmatpush1.bf16.msra.mxu0 %v1020
        %1038 = vmatprep.subr.bf16.mxu0 0
        %1039 = vmatpush2.bf16.msra.mxu0 0
        %1040 = vmatprep.subr.bf16.mxu0 0
        %1041 = vmatpush2.bf16.msra.mxu0 0
        %1042 = vmatprep.subr.bf16.mxu0 0
        %1043 = vmatpush2.bf16.msra.mxu0 0
        %1044 = vmatprep.subr.bf16.mxu0 0
        %1045 = vmatpush2.bf16.msra.mxu0 0
        %1046 = vmatprep.subr.bf16.mxu0 0
        %1047 = vmatpush2.bf16.msra.mxu0 0
        %1048 = vmatprep.subr.bf16.mxu0 0
        %1049 = vmatpush2.bf16.msra.mxu0 0
        %1050 = vmatprep.subr.bf16.mxu0 0
        %1051 = vmatpush2.bf16.msra.mxu0 0
        %1052 = vmatprep.subr.bf16.mxu0 0
        %1053 = vmatpush2.bf16.msra.mxu0 0
        %1054 = vmatprep.mubr.bf16.mxu0 0
        %1055 = vmatmul.mubr.bf16.gmra.mxu0 %v1017
        %v1056 = vpop.f32.mrf.mxu0
        %v1057 = vadd.f32 0.0, %v1056
        %v1058 = vpop.f32.mrf.mxu0
        %v1059 = vpop.f32.mrf.mxu0
        %v1060 = vpop.f32.mrf.mxu0
        %1061 = vdwg.mxu0
        %vm1062 = vcmask 60416
        %1063 = vst.msk [vmem:[#allocation2] sm:$0xf] %vm1062, %v1011
        %1064 = vst.msk [vmem:[#allocation2 + $0x4] sm:$0xf] %vm1062, %v1057
        %1066 = vrot.lane.b32.xlu0 %v842, 120
        %v1067 = vpop.permute.xlu0 %1066
        %1069 = vrot.lane.b32.xlu0 %v844, 120
        %v1070 = vpop.permute.xlu0 %1069
        %v1072 = vsel %vm848, %v1067, 0
        %v1075 = vsel %vm848, %v1070, 0
        %1077 = vmatprep.subr.bf16.mxu0 0
        %1078 = vmatpush1.bf16.xpose.msra.mxu0 0
        %1079 = vmatprep.subr.bf16.mxu0 0
        %1080 = vmatpush1.bf16.xpose.msra.mxu0 0
        %1081 = vmatprep.subr.bf16.mxu0 0
        %1082 = vmatpush1.bf16.xpose.msra.mxu0 0
        %1083 = vmatprep.subr.bf16.mxu0 0
        %1084 = vmatpush1.bf16.xpose.msra.mxu0 0
        %1085 = vmatprep.subr.bf16.mxu0 0
        %1086 = vmatpush1.bf16.xpose.msra.mxu0 0
        %1087 = vmatprep.subr.bf16.mxu0 0
        %1088 = vmatpush1.bf16.xpose.msra.mxu0 0
        %1089 = vmatprep.subr.bf16.mxu0 0
        %1090 = vmatpush1.bf16.xpose.msra.mxu0 0
        %1091 = vmatprep.subr.bf16.mxu0 0
        %1092 = vmatpush1.bf16.xpose.msra.mxu0 %v1075
        %1093 = vmatprep.subr.bf16.mxu0 0
        %1094 = vmatpush2.bf16.xpose.msra.mxu0 0
        %1095 = vmatprep.subr.bf16.mxu0 0
        %1096 = vmatpush2.bf16.xpose.msra.mxu0 0
        %1097 = vmatprep.subr.bf16.mxu0 0
        %1098 = vmatpush2.bf16.xpose.msra.mxu0 0
        %1099 = vmatprep.subr.bf16.mxu0 0
        %1100 = vmatpush2.bf16.xpose.msra.mxu0 0
        %1101 = vmatprep.subr.bf16.mxu0 0
        %1102 = vmatpush2.bf16.xpose.msra.mxu0 0
        %1103 = vmatprep.subr.bf16.mxu0 0
        %1104 = vmatpush2.bf16.xpose.msra.mxu0 0
        %1105 = vmatprep.subr.bf16.mxu0 0
        %1106 = vmatpush2.bf16.xpose.msra.mxu0 0
        %1107 = vmatprep.subr.bf16.mxu0 0
        %1108 = vmatpush2.bf16.xpose.msra.mxu0 0
        %1109 = vmatprep.mubr.bf16.mxu0 0
        %1110 = vmatmul.mubr.bf16.gmra.mxu0 %v1072
        %v1111 = vpop.f32.mrf.mxu0
        %v1112 = vadd.f32 0.0, %v1111
        %v1113 = vpop.f32.mrf.mxu0
        %v1114 = vpop.f32.mrf.mxu0
        %v1115 = vpop.f32.mrf.mxu0
        %1116 = vdwg.mxu0
        %1118 = vrot.lane.b32.xlu0 %v843, 120
        %v1119 = vpop.permute.xlu0 %1118
        %1121 = vrot.lane.b32.xlu0 %v845, 120
        %v1122 = vpop.permute.xlu0 %1121
        %v1124 = vsel %vm848, %v1119, 0
        %v1127 = vsel %vm848, %v1122, 0
        %1129 = vmatprep.subr.bf16.mxu0 0
        %1130 = vmatpush1.bf16.xpose.msra.mxu0 0
        %1131 = vmatprep.subr.bf16.mxu0 0
        %1132 = vmatpush1.bf16.xpose.msra.mxu0 0
        %1133 = vmatprep.subr.bf16.mxu0 0
        %1134 = vmatpush1.bf16.xpose.msra.mxu0 0
        %1135 = vmatprep.subr.bf16.mxu0 0
        %1136 = vmatpush1.bf16.xpose.msra.mxu0 0
        %1137 = vmatprep.subr.bf16.mxu0 0
        %1138 = vmatpush1.bf16.xpose.msra.mxu0 0
        %1139 = vmatprep.subr.bf16.mxu0 0
        %1140 = vmatpush1.bf16.xpose.msra.mxu0 0
        %1141 = vmatprep.subr.bf16.mxu0 0
        %1142 = vmatpush1.bf16.xpose.msra.mxu0 0
        %1143 = vmatprep.subr.bf16.mxu0 0
        %1144 = vmatpush1.bf16.xpose.msra.mxu0 %v1127
        %1145 = vmatprep.subr.bf16.mxu0 0
        %1146 = vmatpush2.bf16.xpose.msra.mxu0 0
        %1147 = vmatprep.subr.bf16.mxu0 0
        %1148 = vmatpush2.bf16.xpose.msra.mxu0 0
        %1149 = vmatprep.subr.bf16.mxu0 0
        %1150 = vmatpush2.bf16.xpose.msra.mxu0 0
        %1151 = vmatprep.subr.bf16.mxu0 0
        %1152 = vmatpush2.bf16.xpose.msra.mxu0 0
        %1153 = vmatprep.subr.bf16.mxu0 0
        %1154 = vmatpush2.bf16.xpose.msra.mxu0 0
        %1155 = vmatprep.subr.bf16.mxu0 0
        %1156 = vmatpush2.bf16.xpose.msra.mxu0 0
        %1157 = vmatprep.subr.bf16.mxu0 0
        %1158 = vmatpush2.bf16.xpose.msra.mxu0 0
        %1159 = vmatprep.subr.bf16.mxu0 0
        %1160 = vmatpush2.bf16.xpose.msra.mxu0 0
        %1161 = vmatprep.mubr.bf16.mxu0 0
        %1162 = vmatmul.mubr.bf16.gmra.mxu0 %v1124
        %v1163 = vpop.f32.mrf.mxu0
        %v1164 = vadd.f32 0.0, %v1163
        %v1165 = vpop.f32.mrf.mxu0
        %v1166 = vpop.f32.mrf.mxu0
        %v1167 = vpop.f32.mrf.mxu0
        %1168 = vdwg.mxu0
        %v1169 = vsel %vm941, %v1112, -inf
        %1170 = vmax.xlane.f32.xlu0 %v1169
        %v1171 = vpop.xlane.xlu0 %1170
        %v1172 = vsel %vm941, %v1164, -inf
        %1173 = vmax.xlane.f32.xlu0 %v1172
        %v1174 = vpop.xlane.xlu0 %1173
        %v1175 = vsub.f32 %v1112, %v1171
        %v1176 = vsub.f32 %v1164, %v1174
        %v1177 = vmul.f32 %v1175, 1.442695
        %v1178 = vpow.pop %v1177
        %v1179 = vmul.f32 %v1176, 1.442695
        %v1180 = vpow.pop %v1179
        %v1181 = vsel %vm941, %v1178, 0.0
        %1182 = vadd.xlane.f32.xlu0 %v1181
        %v1183 = vpop.xlane.xlu0 %1182
        %v1184 = vsel %vm941, %v1180, 0.0
        %1185 = vadd.xlane.f32.xlu0 %v1184
        %v1186 = vpop.xlane.xlu0 %1185
        %v1187 = vrcp.pop %v1183
        %v1188 = vrcp.pop %v1186
        %v1189 = vmul.f32 %v1178, %v1187
        %v1190 = vmul.f32 %v1180, %v1188
        %s1191 = scalar_lea.vmem %s593, 4 [#allocation16]
        %1192 = vst.msk [vmem:[%s1191] sm:$0xf] %vm941, %v1189
        %1193 = vst.msk [vmem:[%s1191 + $0x10] sm:$0xf] %vm941, %v1190
        %v1194 = vpack.c.bf16 %v1189, %v1189
        %v1195 = vpack.c.bf16 %v1190, %v1190
        %1197 = vrot.lane.b32.xlu0 %v846, 120
        %v1198 = vpop.permute.xlu0 %1197
        %v1200 = vsel %vm968, %v1194, 0
        %v1203 = vsel %vm972, %v1198, 0
        %1205 = vmatprep.subr.bf16.mxu0 0
        %1206 = vmatpush1.bf16.msra.mxu0 0
        %1207 = vmatprep.subr.bf16.mxu0 0
        %1208 = vmatpush1.bf16.msra.mxu0 0
        %1209 = vmatprep.subr.bf16.mxu0 0
        %1210 = vmatpush1.bf16.msra.mxu0 0
        %1211 = vmatprep.subr.bf16.mxu0 0
        %1212 = vmatpush1.bf16.msra.mxu0 0
        %1213 = vmatprep.subr.bf16.mxu0 0
        %1214 = vmatpush1.bf16.msra.mxu0 0
        %1215 = vmatprep.subr.bf16.mxu0 0
        %1216 = vmatpush1.bf16.msra.mxu0 0
        %1217 = vmatprep.subr.bf16.mxu0 0
        %1218 = vmatpush1.bf16.msra.mxu0 0
        %1219 = vmatprep.subr.bf16.mxu0 0
        %1220 = vmatpush1.bf16.msra.mxu0 %v1203
        %1221 = vmatprep.subr.bf16.mxu0 0
        %1222 = vmatpush2.bf16.msra.mxu0 0
        %1223 = vmatprep.subr.bf16.mxu0 0
        %1224 = vmatpush2.bf16.msra.mxu0 0
        %1225 = vmatprep.subr.bf16.mxu0 0
        %1226 = vmatpush2.bf16.msra.mxu0 0
        %1227 = vmatprep.subr.bf16.mxu0 0
        %1228 = vmatpush2.bf16.msra.mxu0 0
        %1229 = vmatprep.subr.bf16.mxu0 0
        %1230 = vmatpush2.bf16.msra.mxu0 0
        %1231 = vmatprep.subr.bf16.mxu0 0
        %1232 = vmatpush2.bf16.msra.mxu0 0
        %1233 = vmatprep.subr.bf16.mxu0 0
        %1234 = vmatpush2.bf16.msra.mxu0 0
        %1235 = vmatprep.subr.bf16.mxu0 0
        %1236 = vmatpush2.bf16.msra.mxu0 0
        %1237 = vmatprep.mubr.bf16.mxu0 0
        %1238 = vmatmul.mubr.bf16.gmra.mxu0 %v1200
        %v1239 = vpop.f32.mrf.mxu0
        %v1240 = vadd.f32 0.0, %v1239
        %v1241 = vpop.f32.mrf.mxu0
        %v1242 = vpop.f32.mrf.mxu0
        %v1243 = vpop.f32.mrf.mxu0
        %1244 = vdwg.mxu0
        %1246 = vrot.lane.b32.xlu0 %v847, 120
        %v1247 = vpop.permute.xlu0 %1246
        %v1249 = vsel %vm968, %v1195, 0
        %v1252 = vsel %vm972, %v1247, 0
        %1254 = vmatprep.subr.bf16.mxu0 0
        %1255 = vmatpush1.bf16.msra.mxu0 0
        %1256 = vmatprep.subr.bf16.mxu0 0
        %1257 = vmatpush1.bf16.msra.mxu0 0
        %1258 = vmatprep.subr.bf16.mxu0 0
        %1259 = vmatpush1.bf16.msra.mxu0 0
        %1260 = vmatprep.subr.bf16.mxu0 0
        %1261 = vmatpush1.bf16.msra.mxu0 0
        %1262 = vmatprep.subr.bf16.mxu0 0
        %1263 = vmatpush1.bf16.msra.mxu0 0
        %1264 = vmatprep.subr.bf16.mxu0 0
        %1265 = vmatpush1.bf16.msra.mxu0 0
        %1266 = vmatprep.subr.bf16.mxu0 0
        %1267 = vmatpush1.bf16.msra.mxu0 0
        %1268 = vmatprep.subr.bf16.mxu0 0
        %1269 = vmatpush1.bf16.msra.mxu0 %v1252
        %1270 = vmatprep.subr.bf16.mxu0 0
        %1271 = vmatpush2.bf16.msra.mxu0 0
        %1272 = vmatprep.subr.bf16.mxu0 0
        %1273 = vmatpush2.bf16.msra.mxu0 0
        %1274 = vmatprep.subr.bf16.mxu0 0
        %1275 = vmatpush2.bf16.msra.mxu0 0
        %1276 = vmatprep.subr.bf16.mxu0 0
        %1277 = vmatpush2.bf16.msra.mxu0 0
        %1278 = vmatprep.subr.bf16.mxu0 0
        %1279 = vmatpush2.bf16.msra.mxu0 0
        %1280 = vmatprep.subr.bf16.mxu0 0
        %1281 = vmatpush2.bf16.msra.mxu0 0
        %1282 = vmatprep.subr.bf16.mxu0 0
        %1283 = vmatpush2.bf16.msra.mxu0 0
        %1284 = vmatprep.subr.bf16.mxu0 0
        %1285 = vmatpush2.bf16.msra.mxu0 0
        %1286 = vmatprep.mubr.bf16.mxu0 0
        %1287 = vmatmul.mubr.bf16.gmra.mxu0 %v1249
        %v1288 = vpop.f32.mrf.mxu0
        %v1289 = vadd.f32 0.0, %v1288
        %v1290 = vpop.f32.mrf.mxu0
        %v1291 = vpop.f32.mrf.mxu0
        %v1292 = vpop.f32.mrf.mxu0
        %1293 = vdwg.mxu0
        %1296 = vrot.lane.b32.xlu0 %v1240, 8
        %v1297 = vpop.permute.xlu0 %1296
        %1298 = vrot.lane.b32.xlu0 %v1289, 8
        %v1299 = vpop.permute.xlu0 %1298
        %vm1302 = vcmask 126016
        %1303 = vst.msk [vmem:[#allocation2] sm:$0xf] %vm1302, %v1297
        %1304 = vst.msk [vmem:[#allocation2 + $0x4] sm:$0xf] %vm1302, %v1299
        %1305 = vrot.lane.b32.xlu0 %v842, 112
        %v1306 = vpop.permute.xlu0 %1305
        %1307 = vrot.lane.b32.xlu0 %v844, 112
        %v1308 = vpop.permute.xlu0 %1307
        %v1310 = vsel %vm848, %v1306, 0
        %v1313 = vsel %vm848, %v1308, 0
        %1315 = vmatprep.subr.bf16.mxu0 0
        %1316 = vmatpush1.bf16.xpose.msra.mxu0 0
        %1317 = vmatprep.subr.bf16.mxu0 0
        %1318 = vmatpush1.bf16.xpose.msra.mxu0 0
        %1319 = vmatprep.subr.bf16.mxu0 0
        %1320 = vmatpush1.bf16.xpose.msra.mxu0 0
        %1321 = vmatprep.subr.bf16.mxu0 0
        %1322 = vmatpush1.bf16.xpose.msra.mxu0 0
        %1323 = vmatprep.subr.bf16.mxu0 0
        %1324 = vmatpush1.bf16.xpose.msra.mxu0 0
        %1325 = vmatprep.subr.bf16.mxu0 0
        %1326 = vmatpush1.bf16.xpose.msra.mxu0 0
        %1327 = vmatprep.subr.bf16.mxu0 0
        %1328 = vmatpush1.bf16.xpose.msra.mxu0 0
        %1329 = vmatprep.subr.bf16.mxu0 0
        %1330 = vmatpush1.bf16.xpose.msra.mxu0 %v1313
        %1331 = vmatprep.subr.bf16.mxu0 0
        %1332 = vmatpush2.bf16.xpose.msra.mxu0 0
        %1333 = vmatprep.subr.bf16.mxu0 0
        %1334 = vmatpush2.bf16.xpose.msra.mxu0 0
        %1335 = vmatprep.subr.bf16.mxu0 0
        %1336 = vmatpush2.bf16.xpose.msra.mxu0 0
        %1337 = vmatprep.subr.bf16.mxu0 0
        %1338 = vmatpush2.bf16.xpose.msra.mxu0 0
        %1339 = vmatprep.subr.bf16.mxu0 0
        %1340 = vmatpush2.bf16.xpose.msra.mxu0 0
        %1341 = vmatprep.subr.bf16.mxu0 0
        %1342 = vmatpush2.bf16.xpose.msra.mxu0 0
        %1343 = vmatprep.subr.bf16.mxu0 0
        %1344 = vmatpush2.bf16.xpose.msra.mxu0 0
        %1345 = vmatprep.subr.bf16.mxu0 0
        %1346 = vmatpush2.bf16.xpose.msra.mxu0 0
        %1347 = vmatprep.mubr.bf16.mxu0 0
        %1348 = vmatmul.mubr.bf16.gmra.mxu0 %v1310
        %v1349 = vpop.f32.mrf.mxu0
        %v1350 = vadd.f32 0.0, %v1349
        %v1351 = vpop.f32.mrf.mxu0
        %v1352 = vpop.f32.mrf.mxu0
        %v1353 = vpop.f32.mrf.mxu0
        %1354 = vdwg.mxu0
        %1355 = vrot.lane.b32.xlu0 %v843, 112
        %v1356 = vpop.permute.xlu0 %1355
        %1357 = vrot.lane.b32.xlu0 %v845, 112
        %v1358 = vpop.permute.xlu0 %1357
        %v1360 = vsel %vm848, %v1356, 0
        %v1363 = vsel %vm848, %v1358, 0
        %1365 = vmatprep.subr.bf16.mxu0 0
        %1366 = vmatpush1.bf16.xpose.msra.mxu0 0
        %1367 = vmatprep.subr.bf16.mxu0 0
        %1368 = vmatpush1.bf16.xpose.msra.mxu0 0
        %1369 = vmatprep.subr.bf16.mxu0 0
        %1370 = vmatpush1.bf16.xpose.msra.mxu0 0
        %1371 = vmatprep.subr.bf16.mxu0 0
        %1372 = vmatpush1.bf16.xpose.msra.mxu0 0
        %1373 = vmatprep.subr.bf16.mxu0 0
        %1374 = vmatpush1.bf16.xpose.msra.mxu0 0
        %1375 = vmatprep.subr.bf16.mxu0 0
        %1376 = vmatpush1.bf16.xpose.msra.mxu0 0
        %1377 = vmatprep.subr.bf16.mxu0 0
        %1378 = vmatpush1.bf16.xpose.msra.mxu0 0
        %1379 = vmatprep.subr.bf16.mxu0 0
        %1380 = vmatpush1.bf16.xpose.msra.mxu0 %v1363
        %1381 = vmatprep.subr.bf16.mxu0 0
        %1382 = vmatpush2.bf16.xpose.msra.mxu0 0
        %1383 = vmatprep.subr.bf16.mxu0 0
        %1384 = vmatpush2.bf16.xpose.msra.mxu0 0
        %1385 = vmatprep.subr.bf16.mxu0 0
        %1386 = vmatpush2.bf16.xpose.msra.mxu0 0
        %1387 = vmatprep.subr.bf16.mxu0 0
        %1388 = vmatpush2.bf16.xpose.msra.mxu0 0
        %1389 = vmatprep.subr.bf16.mxu0 0
        %1390 = vmatpush2.bf16.xpose.msra.mxu0 0
        %1391 = vmatprep.subr.bf16.mxu0 0
        %1392 = vmatpush2.bf16.xpose.msra.mxu0 0
        %1393 = vmatprep.subr.bf16.mxu0 0
        %1394 = vmatpush2.bf16.xpose.msra.mxu0 0
        %1395 = vmatprep.subr.bf16.mxu0 0
        %1396 = vmatpush2.bf16.xpose.msra.mxu0 0
        %1397 = vmatprep.mubr.bf16.mxu0 0
        %1398 = vmatmul.mubr.bf16.gmra.mxu0 %v1360
        %v1399 = vpop.f32.mrf.mxu0
        %v1400 = vadd.f32 0.0, %v1399
        %v1401 = vpop.f32.mrf.mxu0
        %v1402 = vpop.f32.mrf.mxu0
        %v1403 = vpop.f32.mrf.mxu0
        %1404 = vdwg.mxu0
        %v1405 = vsel %vm941, %v1350, -inf
        %1406 = vmax.xlane.f32.xlu0 %v1405
        %v1407 = vpop.xlane.xlu0 %1406
        %v1408 = vsel %vm941, %v1400, -inf
        %1409 = vmax.xlane.f32.xlu0 %v1408
        %v1410 = vpop.xlane.xlu0 %1409
        %v1411 = vsub.f32 %v1350, %v1407
        %v1412 = vsub.f32 %v1400, %v1410
        %v1413 = vmul.f32 %v1411, 1.442695
        %v1414 = vpow.pop %v1413
        %v1415 = vmul.f32 %v1412, 1.442695
        %v1416 = vpow.pop %v1415
        %v1417 = vsel %vm941, %v1414, 0.0
        %1418 = vadd.xlane.f32.xlu0 %v1417
        %v1419 = vpop.xlane.xlu0 %1418
        %v1420 = vsel %vm941, %v1416, 0.0
        %1421 = vadd.xlane.f32.xlu0 %v1420
        %v1422 = vpop.xlane.xlu0 %1421
        %v1423 = vrcp.pop %v1419
        %v1424 = vrcp.pop %v1422
        %v1425 = vmul.f32 %v1414, %v1423
        %v1426 = vmul.f32 %v1416, %v1424
        %s1427 = scalar_lea.vmem %s593, 8 [#allocation16]
        %1428 = vst.msk [vmem:[%s1427] sm:$0xf] %vm941, %v1425
        %1429 = vst.msk [vmem:[%s1427 + $0x10] sm:$0xf] %vm941, %v1426
        %v1430 = vpack.c.bf16 %v1425, %v1425
        %v1431 = vpack.c.bf16 %v1426, %v1426
        %1432 = vrot.lane.b32.xlu0 %v846, 112
        %v1433 = vpop.permute.xlu0 %1432
        %v1435 = vsel %vm968, %v1430, 0
        %v1438 = vsel %vm972, %v1433, 0
        %1440 = vmatprep.subr.bf16.mxu0 0
        %1441 = vmatpush1.bf16.msra.mxu0 0
        %1442 = vmatprep.subr.bf16.mxu0 0
        %1443 = vmatpush1.bf16.msra.mxu0 0
        %1444 = vmatprep.subr.bf16.mxu0 0
        %1445 = vmatpush1.bf16.msra.mxu0 0
        %1446 = vmatprep.subr.bf16.mxu0 0
        %1447 = vmatpush1.bf16.msra.mxu0 0
        %1448 = vmatprep.subr.bf16.mxu0 0
        %1449 = vmatpush1.bf16.msra.mxu0 0
        %1450 = vmatprep.subr.bf16.mxu0 0
        %1451 = vmatpush1.bf16.msra.mxu0 0
        %1452 = vmatprep.subr.bf16.mxu0 0
        %1453 = vmatpush1.bf16.msra.mxu0 0
        %1454 = vmatprep.subr.bf16.mxu0 0
        %1455 = vmatpush1.bf16.msra.mxu0 %v1438
        %1456 = vmatprep.subr.bf16.mxu0 0
        %1457 = vmatpush2.bf16.msra.mxu0 0
        %1458 = vmatprep.subr.bf16.mxu0 0
        %1459 = vmatpush2.bf16.msra.mxu0 0
        %1460 = vmatprep.subr.bf16.mxu0 0
        %1461 = vmatpush2.bf16.msra.mxu0 0
        %1462 = vmatprep.subr.bf16.mxu0 0
        %1463 = vmatpush2.bf16.msra.mxu0 0
        %1464 = vmatprep.subr.bf16.mxu0 0
        %1465 = vmatpush2.bf16.msra.mxu0 0
        %1466 = vmatprep.subr.bf16.mxu0 0
        %1467 = vmatpush2.bf16.msra.mxu0 0
        %1468 = vmatprep.subr.bf16.mxu0 0
        %1469 = vmatpush2.bf16.msra.mxu0 0
        %1470 = vmatprep.subr.bf16.mxu0 0
        %1471 = vmatpush2.bf16.msra.mxu0 0
        %1472 = vmatprep.mubr.bf16.mxu0 0
        %1473 = vmatmul.mubr.bf16.gmra.mxu0 %v1435
        %v1474 = vpop.f32.mrf.mxu0
        %v1475 = vadd.f32 0.0, %v1474
        %v1476 = vpop.f32.mrf.mxu0
        %v1477 = vpop.f32.mrf.mxu0
        %v1478 = vpop.f32.mrf.mxu0
        %1479 = vdwg.mxu0
        %1480 = vrot.lane.b32.xlu0 %v847, 112
        %v1481 = vpop.permute.xlu0 %1480
        %v1483 = vsel %vm968, %v1431, 0
        %v1486 = vsel %vm972, %v1481, 0
        %1488 = vmatprep.subr.bf16.mxu0 0
        %1489 = vmatpush1.bf16.msra.mxu0 0
        %1490 = vmatprep.subr.bf16.mxu0 0
        %1491 = vmatpush1.bf16.msra.mxu0 0
        %1492 = vmatprep.subr.bf16.mxu0 0
        %1493 = vmatpush1.bf16.msra.mxu0 0
        %1494 = vmatprep.subr.bf16.mxu0 0
        %1495 = vmatpush1.bf16.msra.mxu0 0
        %1496 = vmatprep.subr.bf16.mxu0 0
        %1497 = vmatpush1.bf16.msra.mxu0 0
        %1498 = vmatprep.subr.bf16.mxu0 0
        %1499 = vmatpush1.bf16.msra.mxu0 0
        %1500 = vmatprep.subr.bf16.mxu0 0
        %1501 = vmatpush1.bf16.msra.mxu0 0
        %1502 = vmatprep.subr.bf16.mxu0 0
        %1503 = vmatpush1.bf16.msra.mxu0 %v1486
        %1504 = vmatprep.subr.bf16.mxu0 0
        %1505 = vmatpush2.bf16.msra.mxu0 0
        %1506 = vmatprep.subr.bf16.mxu0 0
        %1507 = vmatpush2.bf16.msra.mxu0 0
        %1508 = vmatprep.subr.bf16.mxu0 0
        %1509 = vmatpush2.bf16.msra.mxu0 0
        %1510 = vmatprep.subr.bf16.mxu0 0
        %1511 = vmatpush2.bf16.msra.mxu0 0
        %1512 = vmatprep.subr.bf16.mxu0 0
        %1513 = vmatpush2.bf16.msra.mxu0 0
        %1514 = vmatprep.subr.bf16.mxu0 0
        %1515 = vmatpush2.bf16.msra.mxu0 0
        %1516 = vmatprep.subr.bf16.mxu0 0
        %1517 = vmatpush2.bf16.msra.mxu0 0
        %1518 = vmatprep.subr.bf16.mxu0 0
        %1519 = vmatpush2.bf16.msra.mxu0 0
        %1520 = vmatprep.mubr.bf16.mxu0 0
        %1521 = vmatmul.mubr.bf16.gmra.mxu0 %v1483
        %v1522 = vpop.f32.mrf.mxu0
        %v1523 = vadd.f32 0.0, %v1522
        %v1524 = vpop.f32.mrf.mxu0
        %v1525 = vpop.f32.mrf.mxu0
        %v1526 = vpop.f32.mrf.mxu0
        %1527 = vdwg.mxu0
        %1530 = vrot.lane.b32.xlu0 %v1475, 16
        %v1531 = vpop.permute.xlu0 %1530
        %1532 = vrot.lane.b32.xlu0 %v1523, 16
        %v1533 = vpop.permute.xlu0 %1532
        %vm1536 = vcmask 191616
        %1537 = vst.msk [vmem:[#allocation2] sm:$0xf] %vm1536, %v1531
        %1538 = vst.msk [vmem:[#allocation2 + $0x4] sm:$0xf] %vm1536, %v1533
        %1539 = vrot.lane.b32.xlu0 %v842, 104
        %v1540 = vpop.permute.xlu0 %1539
        %1541 = vrot.lane.b32.xlu0 %v844, 104
        %v1542 = vpop.permute.xlu0 %1541
        %v1544 = vsel %vm848, %v1540, 0
        %v1547 = vsel %vm848, %v1542, 0
        %1549 = vmatprep.subr.bf16.mxu0 0
        %1550 = vmatpush1.bf16.xpose.msra.mxu0 0
        %1551 = vmatprep.subr.bf16.mxu0 0
        %1552 = vmatpush1.bf16.xpose.msra.mxu0 0
        %1553 = vmatprep.subr.bf16.mxu0 0
        %1554 = vmatpush1.bf16.xpose.msra.mxu0 0
        %1555 = vmatprep.subr.bf16.mxu0 0
        %1556 = vmatpush1.bf16.xpose.msra.mxu0 0
        %1557 = vmatprep.subr.bf16.mxu0 0
        %1558 = vmatpush1.bf16.xpose.msra.mxu0 0
        %1559 = vmatprep.subr.bf16.mxu0 0
        %1560 = vmatpush1.bf16.xpose.msra.mxu0 0
        %1561 = vmatprep.subr.bf16.mxu0 0
        %1562 = vmatpush1.bf16.xpose.msra.mxu0 0
        %1563 = vmatprep.subr.bf16.mxu0 0
        %1564 = vmatpush1.bf16.xpose.msra.mxu0 %v1547
        %1565 = vmatprep.subr.bf16.mxu0 0
        %1566 = vmatpush2.bf16.xpose.msra.mxu0 0
        %1567 = vmatprep.subr.bf16.mxu0 0
        %1568 = vmatpush2.bf16.xpose.msra.mxu0 0
        %1569 = vmatprep.subr.bf16.mxu0 0
        %1570 = vmatpush2.bf16.xpose.msra.mxu0 0
        %1571 = vmatprep.subr.bf16.mxu0 0
        %1572 = vmatpush2.bf16.xpose.msra.mxu0 0
        %1573 = vmatprep.subr.bf16.mxu0 0
        %1574 = vmatpush2.bf16.xpose.msra.mxu0 0
        %1575 = vmatprep.subr.bf16.mxu0 0
        %1576 = vmatpush2.bf16.xpose.msra.mxu0 0
        %1577 = vmatprep.subr.bf16.mxu0 0
        %1578 = vmatpush2.bf16.xpose.msra.mxu0 0
        %1579 = vmatprep.subr.bf16.mxu0 0
        %1580 = vmatpush2.bf16.xpose.msra.mxu0 0
        %1581 = vmatprep.mubr.bf16.mxu0 0
        %1582 = vmatmul.mubr.bf16.gmra.mxu0 %v1544
        %v1583 = vpop.f32.mrf.mxu0
        %v1584 = vadd.f32 0.0, %v1583
        %v1585 = vpop.f32.mrf.mxu0
        %v1586 = vpop.f32.mrf.mxu0
        %v1587 = vpop.f32.mrf.mxu0
        %1588 = vdwg.mxu0
        %1589 = vrot.lane.b32.xlu0 %v843, 104
        %v1590 = vpop.permute.xlu0 %1589
        %1591 = vrot.lane.b32.xlu0 %v845, 104
        %v1592 = vpop.permute.xlu0 %1591
        %v1594 = vsel %vm848, %v1590, 0
        %v1597 = vsel %vm848, %v1592, 0
        %1599 = vmatprep.subr.bf16.mxu0 0
        %1600 = vmatpush1.bf16.xpose.msra.mxu0 0
        %1601 = vmatprep.subr.bf16.mxu0 0
        %1602 = vmatpush1.bf16.xpose.msra.mxu0 0
        %1603 = vmatprep.subr.bf16.mxu0 0
        %1604 = vmatpush1.bf16.xpose.msra.mxu0 0
        %1605 = vmatprep.subr.bf16.mxu0 0
        %1606 = vmatpush1.bf16.xpose.msra.mxu0 0
        %1607 = vmatprep.subr.bf16.mxu0 0
        %1608 = vmatpush1.bf16.xpose.msra.mxu0 0
        %1609 = vmatprep.subr.bf16.mxu0 0
        %1610 = vmatpush1.bf16.xpose.msra.mxu0 0
        %1611 = vmatprep.subr.bf16.mxu0 0
        %1612 = vmatpush1.bf16.xpose.msra.mxu0 0
        %1613 = vmatprep.subr.bf16.mxu0 0
        %1614 = vmatpush1.bf16.xpose.msra.mxu0 %v1597
        %1615 = vmatprep.subr.bf16.mxu0 0
        %1616 = vmatpush2.bf16.xpose.msra.mxu0 0
        %1617 = vmatprep.subr.bf16.mxu0 0
        %1618 = vmatpush2.bf16.xpose.msra.mxu0 0
        %1619 = vmatprep.subr.bf16.mxu0 0
        %1620 = vmatpush2.bf16.xpose.msra.mxu0 0
        %1621 = vmatprep.subr.bf16.mxu0 0
        %1622 = vmatpush2.bf16.xpose.msra.mxu0 0
        %1623 = vmatprep.subr.bf16.mxu0 0
        %1624 = vmatpush2.bf16.xpose.msra.mxu0 0
        %1625 = vmatprep.subr.bf16.mxu0 0
        %1626 = vmatpush2.bf16.xpose.msra.mxu0 0
        %1627 = vmatprep.subr.bf16.mxu0 0
        %1628 = vmatpush2.bf16.xpose.msra.mxu0 0
        %1629 = vmatprep.subr.bf16.mxu0 0
        %1630 = vmatpush2.bf16.xpose.msra.mxu0 0
        %1631 = vmatprep.mubr.bf16.mxu0 0
        %1632 = vmatmul.mubr.bf16.gmra.mxu0 %v1594
        %v1633 = vpop.f32.mrf.mxu0
        %v1634 = vadd.f32 0.0, %v1633
        %v1635 = vpop.f32.mrf.mxu0
        %v1636 = vpop.f32.mrf.mxu0
        %v1637 = vpop.f32.mrf.mxu0
        %1638 = vdwg.mxu0
        %v1639 = vsel %vm941, %v1584, -inf
        %1640 = vmax.xlane.f32.xlu0 %v1639
        %v1641 = vpop.xlane.xlu0 %1640
        %v1642 = vsel %vm941, %v1634, -inf
        %1643 = vmax.xlane.f32.xlu0 %v1642
        %v1644 = vpop.xlane.xlu0 %1643
        %v1645 = vsub.f32 %v1584, %v1641
        %v1646 = vsub.f32 %v1634, %v1644
        %v1647 = vmul.f32 %v1645, 1.442695
        %v1648 = vpow.pop %v1647
        %v1649 = vmul.f32 %v1646, 1.442695
        %v1650 = vpow.pop %v1649
        %v1651 = vsel %vm941, %v1648, 0.0
        %1652 = vadd.xlane.f32.xlu0 %v1651
        %v1653 = vpop.xlane.xlu0 %1652
        %v1654 = vsel %vm941, %v1650, 0.0
        %1655 = vadd.xlane.f32.xlu0 %v1654
        %v1656 = vpop.xlane.xlu0 %1655
        %v1657 = vrcp.pop %v1653
        %v1658 = vrcp.pop %v1656
        %v1659 = vmul.f32 %v1648, %v1657
        %v1660 = vmul.f32 %v1650, %v1658
        %s1661 = scalar_lea.vmem %s593, 12 [#allocation16]
        %1662 = vst.msk [vmem:[%s1661] sm:$0xf] %vm941, %v1659
        %1663 = vst.msk [vmem:[%s1661 + $0x10] sm:$0xf] %vm941, %v1660
        %v1664 = vpack.c.bf16 %v1659, %v1659
        %v1665 = vpack.c.bf16 %v1660, %v1660
        %1666 = vrot.lane.b32.xlu0 %v846, 104
        %v1667 = vpop.permute.xlu0 %1666
        %v1669 = vsel %vm968, %v1664, 0
        %v1672 = vsel %vm972, %v1667, 0
        %1674 = vmatprep.subr.bf16.mxu0 0
        %1675 = vmatpush1.bf16.msra.mxu0 0
        %1676 = vmatprep.subr.bf16.mxu0 0
        %1677 = vmatpush1.bf16.msra.mxu0 0
        %1678 = vmatprep.subr.bf16.mxu0 0
        %1679 = vmatpush1.bf16.msra.mxu0 0
        %1680 = vmatprep.subr.bf16.mxu0 0
        %1681 = vmatpush1.bf16.msra.mxu0 0
        %1682 = vmatprep.subr.bf16.mxu0 0
        %1683 = vmatpush1.bf16.msra.mxu0 0
        %1684 = vmatprep.subr.bf16.mxu0 0
        %1685 = vmatpush1.bf16.msra.mxu0 0
        %1686 = vmatprep.subr.bf16.mxu0 0
        %1687 = vmatpush1.bf16.msra.mxu0 0
        %1688 = vmatprep.subr.bf16.mxu0 0
        %1689 = vmatpush1.bf16.msra.mxu0 %v1672
        %1690 = vmatprep.subr.bf16.mxu0 0
        %1691 = vmatpush2.bf16.msra.mxu0 0
        %1692 = vmatprep.subr.bf16.mxu0 0
        %1693 = vmatpush2.bf16.msra.mxu0 0
        %1694 = vmatprep.subr.bf16.mxu0 0
        %1695 = vmatpush2.bf16.msra.mxu0 0
        %1696 = vmatprep.subr.bf16.mxu0 0
        %1697 = vmatpush2.bf16.msra.mxu0 0
        %1698 = vmatprep.subr.bf16.mxu0 0
        %1699 = vmatpush2.bf16.msra.mxu0 0
        %1700 = vmatprep.subr.bf16.mxu0 0
        %1701 = vmatpush2.bf16.msra.mxu0 0
        %1702 = vmatprep.subr.bf16.mxu0 0
        %1703 = vmatpush2.bf16.msra.mxu0 0
        %1704 = vmatprep.subr.bf16.mxu0 0
        %1705 = vmatpush2.bf16.msra.mxu0 0
        %1706 = vmatprep.mubr.bf16.mxu0 0
        %1707 = vmatmul.mubr.bf16.gmra.mxu0 %v1669
        %v1708 = vpop.f32.mrf.mxu0
        %v1709 = vadd.f32 0.0, %v1708
        %v1710 = vpop.f32.mrf.mxu0
        %v1711 = vpop.f32.mrf.mxu0
        %v1712 = vpop.f32.mrf.mxu0
        %1713 = vdwg.mxu0
        %1714 = vrot.lane.b32.xlu0 %v847, 104
        %v1715 = vpop.permute.xlu0 %1714
        %v1717 = vsel %vm968, %v1665, 0
        %v1720 = vsel %vm972, %v1715, 0
        %1722 = vmatprep.subr.bf16.mxu0 0
        %1723 = vmatpush1.bf16.msra.mxu0 0
        %1724 = vmatprep.subr.bf16.mxu0 0
        %1725 = vmatpush1.bf16.msra.mxu0 0
        %1726 = vmatprep.subr.bf16.mxu0 0
        %1727 = vmatpush1.bf16.msra.mxu0 0
        %1728 = vmatprep.subr.bf16.mxu0 0
        %1729 = vmatpush1.bf16.msra.mxu0 0
        %1730 = vmatprep.subr.bf16.mxu0 0
        %1731 = vmatpush1.bf16.msra.mxu0 0
        %1732 = vmatprep.subr.bf16.mxu0 0
        %1733 = vmatpush1.bf16.msra.mxu0 0
        %1734 = vmatprep.subr.bf16.mxu0 0
        %1735 = vmatpush1.bf16.msra.mxu0 0
        %1736 = vmatprep.subr.bf16.mxu0 0
        %1737 = vmatpush1.bf16.msra.mxu0 %v1720
        %1738 = vmatprep.subr.bf16.mxu0 0
        %1739 = vmatpush2.bf16.msra.mxu0 0
        %1740 = vmatprep.subr.bf16.mxu0 0
        %1741 = vmatpush2.bf16.msra.mxu0 0
        %1742 = vmatprep.subr.bf16.mxu0 0
        %1743 = vmatpush2.bf16.msra.mxu0 0
        %1744 = vmatprep.subr.bf16.mxu0 0
        %1745 = vmatpush2.bf16.msra.mxu0 0
        %1746 = vmatprep.subr.bf16.mxu0 0
        %1747 = vmatpush2.bf16.msra.mxu0 0
        %1748 = vmatprep.subr.bf16.mxu0 0
        %1749 = vmatpush2.bf16.msra.mxu0 0
        %1750 = vmatprep.subr.bf16.mxu0 0
        %1751 = vmatpush2.bf16.msra.mxu0 0
        %1752 = vmatprep.subr.bf16.mxu0 0
        %1753 = vmatpush2.bf16.msra.mxu0 0
        %1754 = vmatprep.mubr.bf16.mxu0 0
        %1755 = vmatmul.mubr.bf16.gmra.mxu0 %v1717
        %v1756 = vpop.f32.mrf.mxu0
        %v1757 = vadd.f32 0.0, %v1756
        %v1758 = vpop.f32.mrf.mxu0
        %v1759 = vpop.f32.mrf.mxu0
        %v1760 = vpop.f32.mrf.mxu0
        %1761 = vdwg.mxu0
        %1764 = vrot.lane.b32.xlu0 %v1709, 24
        %v1765 = vpop.permute.xlu0 %1764
        %1766 = vrot.lane.b32.xlu0 %v1757, 24
        %v1767 = vpop.permute.xlu0 %1766
        %vm1770 = vcmask 257216
        %1771 = vst.msk [vmem:[#allocation2] sm:$0xf] %vm1770, %v1765
        %1772 = vst.msk [vmem:[#allocation2 + $0x4] sm:$0xf] %vm1770, %v1767
        %v1773 = vld [vmem:[#allocation2] sm:$0xf]
        %v1774 = vld [vmem:[#allocation2 + $0x4] sm:$0xf]
        %v1775 = vpack.c.bf16 %v1773, %v1773
        %v1776 = vpack.c.bf16 %v1774, %v1774
        %v1777 = vld [vmem:[%s10] sm:$0x1]
        %v1779 = vlaneseq
        %v1780 = vshrl.u32 %v1779, 7
        %v1781 = vsub.s32 0, %v1780
        %v1782 = vrot.slane %v1777, %v1781
        %v1785 = vcombine.low %v1775, %v1776
        %v1787 = vunpack.c.l.s4 1983009808
        %v1788 = vunpack.c.0.s8 %v1787
        %v1789 = vlaneseq
        %v1790 = vshrl.u32 %v1789, 7
        %v1791 = vsub.s32 %v1788, %v1790
        %v1792 = vrot.slane %v1785, %v1791
        %v1793 = vcombine.low %v1782, %v1782
        %v1796 = vsel %vm649, %v1792, 0
        %v1799 = vsel %vm649, %v629, 0
        %v1802 = vsel %vm649, %v630, 0
        %1804 = vmatprep.subr.bf16.mxu0 0
        %1805 = vmatpush1.bf16.xpose.msra.mxu0 0
        %1806 = vmatprep.subr.bf16.mxu0 0
        %1807 = vmatpush1.bf16.xpose.msra.mxu0 0
        %1808 = vmatprep.subr.bf16.mxu0 0
        %1809 = vmatpush1.bf16.xpose.msra.mxu0 0
        %1810 = vmatprep.subr.bf16.mxu0 0
        %1811 = vmatpush1.bf16.xpose.msra.mxu0 0
        %1812 = vmatprep.subr.bf16.mxu0 0
        %1813 = vmatpush1.bf16.xpose.msra.mxu0 0
        %1814 = vmatprep.subr.bf16.mxu0 0
        %1815 = vmatpush1.bf16.xpose.msra.mxu0 0
        %1816 = vmatprep.subr.bf16.mxu0 0
        %1817 = vmatpush1.bf16.xpose.msra.mxu0 %v1802
        %1818 = vmatprep.subr.bf16.mxu0 0
        %1819 = vmatpush1.bf16.xpose.msra.mxu0 %v1799
        %1820 = vmatprep.subr.bf16.mxu0 0
        %1821 = vmatpush2.bf16.xpose.msra.mxu0 0
        %1822 = vmatprep.subr.bf16.mxu0 0
        %1823 = vmatpush2.bf16.xpose.msra.mxu0 0
        %1824 = vmatprep.subr.bf16.mxu0 0
        %1825 = vmatpush2.bf16.xpose.msra.mxu0 0
        %1826 = vmatprep.subr.bf16.mxu0 0
        %1827 = vmatpush2.bf16.xpose.msra.mxu0 0
        %1828 = vmatprep.subr.bf16.mxu0 0
        %1829 = vmatpush2.bf16.xpose.msra.mxu0 0
        %1830 = vmatprep.subr.bf16.mxu0 0
        %1831 = vmatpush2.bf16.xpose.msra.mxu0 0
        %1832 = vmatprep.subr.bf16.mxu0 0
        %1833 = vmatpush2.bf16.xpose.msra.mxu0 0
        %1834 = vmatprep.subr.bf16.mxu0 0
        %1835 = vmatpush2.bf16.xpose.msra.mxu0 0
        %1836 = vmatprep.mubr.bf16.mxu0 0
        %1837 = vmatmul.mubr.bf16.gmra.mxu0 %v1796
        %v1838 = vpop.f32.mrf.mxu0
        %v1839 = vadd.f32 %v1793, %v1838
        %v1840 = vpop.f32.mrf.mxu0
        %v1841 = vpop.f32.mrf.mxu0
        %v1842 = vpop.f32.mrf.mxu0
        %1843 = vdwg.mxu0
        %v1845 = vcombine.high %v1839, %v1839
        %vm1847 = vcmask 257024
        %1848 = vst.msk [vmem:[%s586] sm:$0xf] %vm1847, %v1839
        %1849 = vst.msk [vmem:[%s586 + $0x4] sm:$0xf] %vm1847, %v1845
        %s1850 = sand.u32 %s308, 1
        %s1851 = scalar_lea.sflag [#allocation5], %s1850
        %s1852 = sand.u32 %s308, 1
        %s1853 = smul.addr %s1852, 8
        %s1854 = scalar_lea.vmem [#allocation15], %s1853
        %s1855 = sand.u32 %s336, 1
        %s1856 = scalar_lea.sflag [#allocation17], %s1855
        %s1857 = sand.u32 %s336, 1
        %s1858 = smul.addr %s1857, 32
        %s1859 = scalar_lea.vmem [#allocation16], %s1858
        // Predicated region
        $region93: #{tpu_custom_call.1} parent=63 // pred_check
          %p1860 = pneg %p318
        $region94: #{tpu_custom_call.1} parent=63 // pred_check_branch
          %1862 = sbr.rel (%p1860) target = $region96
        $region95: #{tpu_custom_call.1} parent=63 // pred_region
          %s1864 = ssub.s32 128, 128
          %1865 = vsyncadd %s1851, %s1864
          %s1866 = sadd.s32 %s43, %s42
          %s1867 = smul.addr %s1866, 64
          %s1868 = scalar_lea.hbm %s11, %s1867
          %s1869 = sshll.u32 %s1854, 4
          %s1870 = int_to_ptr.vmem [resolvable:$true] %s1869
          %1875 = dma.vmem_to_hbm [thread:$0]  %s1870, 128, %s1868, %s1851, 64, 128, 4
        $region96: #{tpu_custom_call.1} parent=63 // pred_fallthru
          _
        // Predicated region
        $region97: #{tpu_custom_call.1} parent=63 // pred_check
          %p1876 = pneg %p346
        $region98: #{tpu_custom_call.1} parent=63 // pred_check_branch
          %1878 = sbr.rel (%p1876) target = $region100
        $region99: #{tpu_custom_call.1} parent=63 // pred_region
          %s1880 = ssub.s32 512, 512
          %1881 = vsyncadd %s1856, %s1880
          %s1882 = smul.addr %s42, 8
          %s1883 = sadd.s32 %s43, %s1882
          %s1884 = smul.addr %s1883, 64
          %s1885 = scalar_lea.hbm %s12, %s1884
          %s1886 = sshll.u32 %s1859, 4
          %s1887 = int_to_ptr.vmem [resolvable:$true] %s1886
          %1892 = dma.vmem_to_hbm [thread:$0]  %s1887, 512, %s1885, %s1856, 64, 64, 4
        $region100: #{tpu_custom_call.1} parent=63 // pred_fallthru
          _
      $region64: #{tpu_custom_call.1} parent=5 // pred_fallthru
        _
      %p1893 = scmp.le.s32.totalorder 2, %s33
      // Predicated region
      $region101: #{tpu_custom_call.1} parent=5 // pred_check
        %p1894 = pneg %p1893
      $region102: #{tpu_custom_call.1} parent=5 // pred_check_branch
        %1896 = sbr.rel (%p1894) target = $region104
      $region103: #{tpu_custom_call.1} parent=5 // pred_region
        %s1897 = ssub.s32 %s33, 2
        // Predicated region
        $region105: #{tpu_custom_call.1} parent=103 // pred_check
          %p1898 = pneg %p324
        $region106: #{tpu_custom_call.1} parent=103 // pred_check_branch
          %1900 = sbr.rel (%p1898) target = $region108
        $region107: #{tpu_custom_call.1} parent=103 // pred_region
          %s1901 = sand.u32 %s309, 1
          %s1902 = scalar_lea.sflag [#allocation5], %s1901
          %s1903 = sand.u32 %s309, 1
          %s1904 = smul.addr %s1903, 8
          %s1905 = scalar_lea.vmem [#allocation15], %s1904
          %1906 = dma.done %s1902, 128
        $region108: #{tpu_custom_call.1} parent=103 // pred_fallthru
          _
        // Predicated region
        $region109: #{tpu_custom_call.1} parent=103 // pred_check
          %p1907 = pneg %p352
        $region110: #{tpu_custom_call.1} parent=103 // pred_check_branch
          %1909 = sbr.rel (%p1907) target = $region112
        $region111: #{tpu_custom_call.1} parent=103 // pred_region
          %s1910 = sand.u32 %s337, 1
          %s1911 = scalar_lea.sflag [#allocation17], %s1910
          %s1912 = sand.u32 %s337, 1
          %s1913 = smul.addr %s1912, 32
          %s1914 = scalar_lea.vmem [#allocation16], %s1913
          %1915 = dma.done %s1911, 512
        $region112: #{tpu_custom_call.1} parent=103 // pred_fallthru
          _
      $region104: #{tpu_custom_call.1} parent=5 // pred_fallthru
        _
    $region6: #{tpu_custom_call.1} parent=1 // loop_footer
      %s37 = sadd.s32 1, %s33
    $region7: #{tpu_custom_call.1} parent=1 // loop_footer_branch
      %32 = sbr.rel target = $region3
    $region8: #{tpu_custom_call.1} parent=1 // loop_exit
      _
    %1916 = vsyncpa [#allocation4], 1
    %s1917 = scalar_lea.sflag [#allocation4], 1
    %1918 = vsyncpa %s1917, 1
    %1919 = vsyncpa [#allocation7], 1
    %s1920 = scalar_lea.sflag [#allocation7], 1
    %1921 = vsyncpa %s1920, 1
    %1922 = vsyncpa [#allocation10], 1
    %1923 = vsyncpa [#allocation13], 1
    %1924 = vsyncpa [#allocation5], 1
    %s1925 = scalar_lea.sflag [#allocation5], 1
    %1926 = vsyncpa %s1925, 1
    %1927 = vsyncpa [#allocation17], 1
    %s1928 = scalar_lea.sflag [#allocation17], 1
    %1929 = vsyncpa %s1928, 1

</llo_original>
